<compile_context>
chip_gen: v5e
topology: v5e:2x2
jax: 0.10.0
libtpu: 0.0.40
codegen_flags: <defaults>
</compile_context>

<pallas_src>
import functools

import numpy as np

import jax
import jax.numpy as jnp
from jax import lax
from jax.experimental import pallas as pl
from jax.experimental.pallas import tpu as pltpu

LANE = 128      # lane tile (last dim)
SUBLANE = 8     # sublane tile (second-to-last dim)
VMEM_BUDGET = 24 * 1024 * 1024   # conservative per-block VMEM target
VMEM_LIMIT = 32 * 1024 * 1024    # raised scoped-VMEM limit (safe on v5e/v6e/v7x)


def _round_up(x, m):
    return ((x + m - 1) // m) * m


def _pick_batch_block(batch_pad, seq_len, in_pad, hid_pad, budget_bytes):
    """Largest multiple of 8 dividing batch_pad whose VMEM footprint fits."""
    # per-batch-row bytes: x block (2x buffered) + h_seq block (2x) + gx scratch
    per_row = 4 * seq_len * (2 * in_pad + 2 * hid_pad + 4 * hid_pad) + 4 * 4 * hid_pad
    weights = 4 * 2 * (in_pad * 4 * hid_pad + hid_pad * 4 * hid_pad + 4 * hid_pad)
    avail = max(budget_bytes - weights, per_row * SUBLANE)
    best = SUBLANE
    b = SUBLANE
    while b <= batch_pad:
        if batch_pad % b == 0 and b * per_row <= avail:
            best = b
        b += SUBLANE
    return best


# ---------------------------------------------------------------------------
# Fused LSTM layer kernel: hoisted input projection (one big MXU matmul into
# VMEM scratch) + serial recurrence over the whole sequence in one grid step.
# ---------------------------------------------------------------------------
def _lstm_layer_kernel(x_ref, wih_ref, whh_ref, b_ref,
                       hseq_ref, hlast_ref, clast_ref, gx_sc,
                       *, seq_len, b_block, in_pad, hid_pad, unroll):
    H = hid_pad  # multiple of 128 -> all gate slices are lane-tile aligned

    # --- hoisted, time-invariant input projection for ALL time steps --------
    # [seq*b_block, in_pad] @ [in_pad, 4H] ; bias folded in once; stays in VMEM.
    x2 = x_ref[...].reshape(seq_len * b_block, in_pad)
    gx = jnp.dot(x2, wih_ref[...], preferred_element_type=jnp.float32) + b_ref[...]
    gx_sc[...] = gx.reshape(seq_len, b_block, 4 * H)

    # --- serial recurrence: only h_prev @ W_hh remains on the critical path --
    def step(t, carry):
        h_prev, c_prev = carry
        gates = gx_sc[t] + jnp.dot(h_prev, whh_ref[...],
                                   preferred_element_type=jnp.float32)
        i_g = jax.nn.sigmoid(gates[:, 0 * H:1 * H])
        f_g = jax.nn.sigmoid(gates[:, 1 * H:2 * H])
        g_g = jnp.tanh(gates[:, 2 * H:3 * H])
        o_g = jax.nn.sigmoid(gates[:, 3 * H:4 * H])
        c_new = f_g * c_prev + i_g * g_g
        h_new = o_g * jnp.tanh(c_new)
        hseq_ref[t] = h_new                 # lane-dense [b_block, H] store
        return (h_new, c_new)

    zeros = jnp.zeros((b_block, H), jnp.float32)
    h_last, c_last = lax.fori_loop(0, seq_len, step, (zeros, zeros),
                                   unroll=unroll)

    # final states written exactly once (not every time step)
    hlast_ref[...] = h_last
    clast_ref[...] = c_last


def lstm_layer(x, w_ih_t, w_hh_t, bias, seq_len, batch_pad, in_pad, hid_pad):
    """x: [seq, batch_pad, in_pad] f32.

    Returns (h_seq [seq, batch_pad, hid_pad],
             h_last [batch_pad, hid_pad], c_last [batch_pad, hid_pad]).
    """
    g = 4 * hid_pad
    b_block = _pick_batch_block(batch_pad, seq_len, in_pad, hid_pad, VMEM_BUDGET)
    unroll = True if seq_len <= 32 else 8

    kernel = functools.partial(
        _lstm_layer_kernel, seq_len=seq_len, b_block=b_block,
        in_pad=in_pad, hid_pad=hid_pad, unroll=unroll)

    out_shapes = (
        jax.ShapeDtypeStruct((seq_len, batch_pad, hid_pad), jnp.float32),
        jax.ShapeDtypeStruct((batch_pad, hid_pad), jnp.float32),
        jax.ShapeDtypeStruct((batch_pad, hid_pad), jnp.float32),
    )

    grid_spec = pltpu.PrefetchScalarGridSpec(
        num_scalar_prefetch=0,
        grid=(batch_pad // b_block,),          # parallel over batch blocks
        in_specs=[
            pl.BlockSpec((seq_len, b_block, in_pad), lambda b: (0, b, 0)),
            pl.BlockSpec((in_pad, g), lambda b: (0, 0)),
            pl.BlockSpec((hid_pad, g), lambda b: (0, 0)),
            pl.BlockSpec((1, g), lambda b: (0, 0)),
        ],
        out_specs=[
            pl.BlockSpec((seq_len, b_block, hid_pad), lambda b: (0, b, 0)),
            pl.BlockSpec((b_block, hid_pad), lambda b: (b, 0)),
            pl.BlockSpec((b_block, hid_pad), lambda b: (b, 0)),
        ],
        scratch_shapes=[
            pltpu.VMEM((seq_len, b_block, g), jnp.float32),   # gates_x scratch
        ],
    )

    return pl.pallas_call(
        kernel,
        out_shape=out_shapes,
        grid_spec=grid_spec,
        compiler_params=pltpu.CompilerParams(
            dimension_semantics=("parallel",),
            vmem_limit_bytes=VMEM_LIMIT),
    )(x, w_ih_t, w_hh_t, bias)


# ---------------------------------------------------------------------------
# Parameter init + packing (pad hid -> multiple of 128, gate-blockwise)
# ---------------------------------------------------------------------------
def _pack_lstm_weights(w_ih, w_hh, b_ih, b_hh, in_dim, hid_dim, in_pad, hid_pad):
    """PyTorch layout [4H, in]/[4H, H] -> padded, pre-transposed x@W layout."""
    H = hid_dim
    w_ih4 = w_ih.reshape(4, H, in_dim)
    w_ih4 = jnp.pad(w_ih4, ((0, 0), (0, hid_pad - H), (0, in_pad - in_dim)))
    w_ih_t = jnp.transpose(w_ih4, (2, 0, 1)).reshape(in_pad, 4 * hid_pad)

    w_hh4 = w_hh.reshape(4, H, H)
    w_hh4 = jnp.pad(w_hh4, ((0, 0), (0, hid_pad - H), (0, hid_pad - H)))
    w_hh_t = jnp.transpose(w_hh4, (2, 0, 1)).reshape(hid_pad, 4 * hid_pad)

    b = (b_ih + b_hh).reshape(4, H)
    b = jnp.pad(b, ((0, 0), (0, hid_pad - H))).reshape(1, 4 * hid_pad)
    return w_ih_t, w_hh_t, b


def init_encoder_params(key, input_dim, emb_dim, hid_dim, n_layers):
    """PyTorch-style init: Embedding ~ N(0,1), LSTM ~ U(-1/sqrt(H), 1/sqrt(H))."""
    emb_pad = _round_up(emb_dim, LANE)
    hid_pad = _round_up(hid_dim, LANE)

    params = {}
    k_emb, key = jax.random.split(key)
    params["embedding"] = jax.random.normal(k_emb, (input_dim, emb_dim),
                                            jnp.float32)

    bound = float(hid_dim) ** -0.5
    packed, raw = [], []
    for layer in range(n_layers):
        in_dim = emb_dim if layer == 0 else hid_dim
        in_pad = emb_pad if layer == 0 else hid_pad
        key, k1, k2, k3, k4 = jax.random.split(key, 5)
        w_ih = jax.random.uniform(k1, (4 * hid_dim, in_dim), jnp.float32,
                                  -bound, bound)
        w_hh = jax.random.uniform(k2, (4 * hid_dim, hid_dim), jnp.float32,
                                  -bound, bound)
        b_ih = jax.random.uniform(k3, (4 * hid_dim,), jnp.float32, -bound, bound)
        b_hh = jax.random.uniform(k4, (4 * hid_dim,), jnp.float32, -bound, bound)
        w_ih_t, w_hh_t, bias = _pack_lstm_weights(
            w_ih, w_hh, b_ih, b_hh, in_dim, hid_dim, in_pad, hid_pad)
        packed.append({"w_ih_t": w_ih_t, "w_hh_t": w_hh_t, "bias": bias})
        raw.append({"w_ih": w_ih, "w_hh": w_hh, "b_ih": b_ih, "b_hh": b_hh})
    params["lstm"] = packed
    params["lstm_raw"] = raw   # kept only for the pure-JAX reference check
    return params


# ---------------------------------------------------------------------------
# Encoder forward (matches PyTorch Encoder.forward in eval mode)
# ---------------------------------------------------------------------------
def encoder_forward(params, src, emb_dim, hid_dim, n_layers):
    """src: [seq_len, batch] int32 token ids (seq-first, like nn.LSTM default).
    Returns (hidden, cell), each [n_layers, batch, hid_dim]."""
    emb_pad = _round_up(emb_dim, LANE)
    hid_pad = _round_up(hid_dim, LANE)
    seq_len, batch = src.shape
    batch_pad = _round_up(batch, SUBLANE)

    # Embedding lookup is a gather: kept as JAX glue (not the hot path).
    # Dropout is identity in eval/inference mode.
    # TODO(synk): training-mode dropout (on embeddings and between LSTM layers)
    # is not implemented; forward matches eval() semantics.
    embedded = jnp.take(params["embedding"], src, axis=0)       # [T, B, E]
    x = jnp.pad(embedded,
                ((0, 0), (0, batch_pad - batch), (0, emb_pad - emb_dim)))

    hiddens, cells = [], []
    for layer in range(n_layers):
        p = params["lstm"][layer]
        in_pad = emb_pad if layer == 0 else hid_pad
        h_seq, h_last, c_last = lstm_layer(
            x, p["w_ih_t"], p["w_hh_t"], p["bias"],
            seq_len, batch_pad, in_pad, hid_pad)
        hiddens.append(h_last[:batch, :hid_dim])
        cells.append(c_last[:batch, :hid_dim])
        # Padded hidden lanes are exactly zero and padded batch rows are
        # independent (dropped at the end), so h_seq feeds the next layer as-is.
        x = h_seq
    hidden = jnp.stack(hiddens, axis=0)   # [n_layers, batch, hid]
    cell = jnp.stack(cells, axis=0)       # [n_layers, batch, hid]
    return hidden, cell


# ---------------------------------------------------------------------------
# Pure-JAX reference (for a correctness sanity check)
# ---------------------------------------------------------------------------
def _reference_encoder(params, src, hid_dim, n_layers):
    seq_len, batch = src.shape
    x = jnp.take(params["embedding"], src, axis=0)
    hiddens, cells = [], []
    hp = jax.lax.Precision.HIGHEST
    for layer in range(n_layers):
        raw = params["lstm_raw"][layer]
        w_ih, w_hh = raw["w_ih"], raw["w_hh"]
        b = raw["b_ih"] + raw["b_hh"]

        def cell_fn(carry, x_t, w_ih=w_ih, w_hh=w_hh, b=b):
            h, c = carry
            gates = (jnp.dot(x_t, w_ih.T, precision=hp)
                     + jnp.dot(h, w_hh.T, precision=hp) + b)
            i, f, g, o = jnp.split(gates, 4, axis=-1)
            i, f, o = jax.nn.sigmoid(i), jax.nn.sigmoid(f), jax.nn.sigmoid(o)
            g = jnp.tanh(g)
            c = f * c + i * g
            h = o * jnp.tanh(c)
            return (h, c), h

        h0 = jnp.zeros((batch, hid_dim), jnp.float32)
        c0 = jnp.zeros((batch, hid_dim), jnp.float32)
        (h_last, c_last), h_seq = lax.scan(cell_fn, (h0, c0), x)
        hiddens.append(h_last)
        cells.append(c_last)
        x = h_seq
    return jnp.stack(hiddens), jnp.stack(cells)


if __name__ == "__main__":
    # Small shapes consistent with the module.
    INPUT_DIM = 50    # vocab size
    EMB_DIM = 32
    HID_DIM = 32
    N_LAYERS = 2
    SEQ_LEN = 8
    BATCH = 4

    key = jax.random.PRNGKey(0)
    k_params, k_src = jax.random.split(key)

    params = init_encoder_params(k_params, INPUT_DIM, EMB_DIM, HID_DIM, N_LAYERS)
    src = jax.random.randint(k_src, (SEQ_LEN, BATCH), 0, INPUT_DIM, jnp.int32)

    hidden, cell = encoder_forward(params, src, EMB_DIM, HID_DIM, N_LAYERS)
    jax.block_until_ready((hidden, cell))

    assert hidden.shape == (N_LAYERS, BATCH, HID_DIM)
    assert cell.shape == (N_LAYERS, BATCH, HID_DIM)

    ref_hidden, ref_cell = _reference_encoder(params, src, HID_DIM, N_LAYERS)
    np.testing.assert_allclose(np.asarray(hidden), np.asarray(ref_hidden),
                               atol=2e-3, rtol=2e-3)
    np.testing.assert_allclose(np.asarray(cell), np.asarray(ref_cell),
                               atol=2e-3, rtol=2e-3)

    print("KERNEL_OK")
</pallas_src>

<mosaic_0001>
module attributes {stable_mosaic.version = 11 : i64} {
  func.func @_lstm_layer_kernel(%arg0: i32, %arg1: memref<8x8x128xf32, #tpu.memory_space<vmem>>, %arg2: memref<128x512xf32, #tpu.memory_space<vmem>>, %arg3: memref<128x512xf32, #tpu.memory_space<vmem>>, %arg4: memref<1x512xf32, #tpu.memory_space<vmem>>, %arg5: memref<8x8x128xf32, #tpu.memory_space<vmem>>, %arg6: memref<8x128xf32, #tpu.memory_space<vmem>>, %arg7: memref<8x128xf32, #tpu.memory_space<vmem>>, %arg8: memref<8x8x512xf32, #tpu.memory_space<vmem>>) attributes {dimension_semantics = [#tpu.dimension_semantics<parallel>], iteration_bounds = array<i64: 1>, scalar_prefetch = 0 : i64, scratch_operands = 1 : i64, tpu.core_type = #tpu.core_type<tc>, window_params = [{transform_indices = @transform_0, window_bounds = array<i64: 8, 8, 128>}, {pipeline_mode = #tpu.pipeline_mode<synchronous>, transform_indices = @transform_1, window_bounds = array<i64: 128, 512>}, {pipeline_mode = #tpu.pipeline_mode<synchronous>, transform_indices = @transform_2, window_bounds = array<i64: 128, 512>}, {pipeline_mode = #tpu.pipeline_mode<synchronous>, transform_indices = @transform_3, window_bounds = array<i64: 1, 512>}, {transform_indices = @transform_4, window_bounds = array<i64: 8, 8, 128>}, {transform_indices = @transform_5, window_bounds = array<i64: 8, 128>}, {transform_indices = @transform_6, window_bounds = array<i64: 8, 128>}]} {
    %c0 = arith.constant 0 : index
    %c0_0 = arith.constant 0 : index
    %c0_1 = arith.constant 0 : index
    %0 = vector.load %arg1[%c0, %c0_0, %c0_1] : memref<8x8x128xf32, #tpu.memory_space<vmem>>, vector<8x8x128xf32>
    %1 = vector.shape_cast %0 : vector<8x8x128xf32> to vector<64x128xf32>
    %c0_2 = arith.constant 0 : index
    %c0_3 = arith.constant 0 : index
    %2 = vector.load %arg2[%c0_2, %c0_3] : memref<128x512xf32, #tpu.memory_space<vmem>>, vector<128x512xf32>
    %cst = arith.constant dense<0.000000e+00> : vector<64x512xf32>
    %3 = tpu.matmul %1, %2, %cst {dimension_numbers = #tpu.dot_dimension_numbers<[1], [0], [0], [1], [0, 0, 1, 1], [], []>} : vector<64x128xf32>, vector<128x512xf32>, vector<64x512xf32> -> vector<64x512xf32>
    %c0_4 = arith.constant 0 : index
    %c0_5 = arith.constant 0 : index
    %4 = vector.load %arg4[%c0_4, %c0_5] : memref<1x512xf32, #tpu.memory_space<vmem>>, vector<1x512xf32>
    %5 = vector.broadcast %4 : vector<1x512xf32> to vector<64x512xf32>
    %6 = arith.addf %3, %5 : vector<64x512xf32>
    %7 = vector.shape_cast %6 : vector<64x512xf32> to vector<8x8x512xf32>
    %c0_6 = arith.constant 0 : index
    %c0_7 = arith.constant 0 : index
    %c0_8 = arith.constant 0 : index
    %8 = vector.load %arg8[%c0_6, %c0_7, %c0_8] : memref<8x8x512xf32, #tpu.memory_space<vmem>>, vector<8x8x512xf32>
    tpu.vector_store %arg8[%c0_6, %c0_7, %c0_8], %7 {strides = array<i32>} : memref<8x8x512xf32, #tpu.memory_space<vmem>>, vector<8x8x512xf32>,
    %cst_9 = arith.constant 0.000000e+00 : f32
    %9 = vector.broadcast %cst_9 : f32 to vector<8x128xf32>
    %c0_i32 = arith.constant 0 : i32
    %10 = arith.index_cast %c0_i32 : i32 to index
    %c0_10 = arith.constant 0 : index
    %c0_11 = arith.constant 0 : index
    %11 = vector.load %arg8[%10, %c0_10, %c0_11] : memref<8x8x512xf32, #tpu.memory_space<vmem>>, vector<1x8x512xf32>
    %12 = vector.shape_cast %11 : vector<1x8x512xf32> to vector<8x512xf32>
    %c0_12 = arith.constant 0 : index
    %c0_13 = arith.constant 0 : index
    %13 = vector.load %arg3[%c0_12, %c0_13] : memref<128x512xf32, #tpu.memory_space<vmem>>, vector<128x512xf32>
    %cst_14 = arith.constant dense<0.000000e+00> : vector<8x512xf32>
    %14 = tpu.matmul %9, %13, %cst_14 {dimension_numbers = #tpu.dot_dimension_numbers<[1], [0], [0], [1], [0, 0, 1, 1], [], []>} : vector<8x128xf32>, vector<128x512xf32>, vector<8x512xf32> -> vector<8x512xf32>
    %15 = arith.addf %12, %14 : vector<8x512xf32>
    %16 = vector.extract_strided_slice %15 {offsets = [0, 0], sizes = [8, 128], strides = [1, 1]} : vector<8x512xf32> to vector<8x128xf32>
    %17 = arith.negf %16 : vector<8x128xf32>
    %18 = math.exp %17 : vector<8x128xf32>
    %cst_15 = arith.constant 1.000000e+00 : f32
    %19 = vector.broadcast %cst_15 : f32 to vector<8x128xf32>
    %20 = arith.addf %19, %18 : vector<8x128xf32>
    %21 = arith.divf %19, %20 : vector<8x128xf32>
    %22 = vector.extract_strided_slice %15 {offsets = [0, 128], sizes = [8, 128], strides = [1, 1]} : vector<8x512xf32> to vector<8x128xf32>
    %23 = arith.negf %22 : vector<8x128xf32>
    %24 = math.exp %23 : vector<8x128xf32>
    %cst_16 = arith.constant 1.000000e+00 : f32
    %25 = vector.broadcast %cst_16 : f32 to vector<8x128xf32>
    %26 = arith.addf %25, %24 : vector<8x128xf32>
    %27 = arith.divf %25, %26 : vector<8x128xf32>
    %28 = vector.extract_strided_slice %15 {offsets = [0, 256], sizes = [8, 128], strides = [1, 1]} : vector<8x512xf32> to vector<8x128xf32>
    %29 = math.tanh %28 : vector<8x128xf32>
    %30 = vector.extract_strided_slice %15 {offsets = [0, 384], sizes = [8, 128], strides = [1, 1]} : vector<8x512xf32> to vector<8x128xf32>
    %31 = arith.negf %30 : vector<8x128xf32>
    %32 = math.exp %31 : vector<8x128xf32>
    %cst_17 = arith.constant 1.000000e+00 : f32
    %33 = vector.broadcast %cst_17 : f32 to vector<8x128xf32>
    %34 = arith.addf %33, %32 : vector<8x128xf32>
    %35 = arith.divf %33, %34 : vector<8x128xf32>
    %36 = arith.mulf %27, %9 : vector<8x128xf32>
    %37 = arith.mulf %21, %29 : vector<8x128xf32>
    %38 = arith.addf %36, %37 : vector<8x128xf32>
    %39 = math.tanh %38 : vector<8x128xf32>
    %40 = arith.mulf %35, %39 : vector<8x128xf32>
    %41 = arith.index_cast %c0_i32 : i32 to index
    %c0_18 = arith.constant 0 : index
    %c0_19 = arith.constant 0 : index
    %42 = vector.load %arg5[%41, %c0_18, %c0_19] : memref<8x8x128xf32, #tpu.memory_space<vmem>>, vector<1x8x128xf32>
    %43 = vector.shape_cast %42 : vector<1x8x128xf32> to vector<8x128xf32>
    %44 = vector.shape_cast %40 : vector<8x128xf32> to vector<1x8x128xf32>
    tpu.vector_store %arg5[%41, %c0_18, %c0_19], %44 {strides = array<i32>} : memref<8x8x128xf32, #tpu.memory_space<vmem>>, vector<1x8x128xf32>,
    %c1_i32 = arith.constant 1 : i32
    %45 = arith.index_cast %c1_i32 : i32 to index
    %c0_20 = arith.constant 0 : index
    %c0_21 = arith.constant 0 : index
    %46 = vector.load %arg8[%45, %c0_20, %c0_21] : memref<8x8x512xf32, #tpu.memory_space<vmem>>, vector<1x8x512xf32>
    %47 = vector.shape_cast %46 : vector<1x8x512xf32> to vector<8x512xf32>
    %c0_22 = arith.constant 0 : index
    %c0_23 = arith.constant 0 : index
    %48 = vector.load %arg3[%c0_22, %c0_23] : memref<128x512xf32, #tpu.memory_space<vmem>>, vector<128x512xf32>
    %cst_24 = arith.constant dense<0.000000e+00> : vector<8x512xf32>
    %49 = tpu.matmul %40, %48, %cst_24 {dimension_numbers = #tpu.dot_dimension_numbers<[1], [0], [0], [1], [0, 0, 1, 1], [], []>} : vector<8x128xf32>, vector<128x512xf32>, vector<8x512xf32> -> vector<8x512xf32>
    %50 = arith.addf %47, %49 : vector<8x512xf32>
    %51 = vector.extract_strided_slice %50 {offsets = [0, 0], sizes = [8, 128], strides = [1, 1]} : vector<8x512xf32> to vector<8x128xf32>
    %52 = arith.negf %51 : vector<8x128xf32>
    %53 = math.exp %52 : vector<8x128xf32>
    %cst_25 = arith.constant 1.000000e+00 : f32
    %54 = vector.broadcast %cst_25 : f32 to vector<8x128xf32>
    %55 = arith.addf %54, %53 : vector<8x128xf32>
    %56 = arith.divf %54, %55 : vector<8x128xf32>
    %57 = vector.extract_strided_slice %50 {offsets = [0, 128], sizes = [8, 128], strides = [1, 1]} : vector<8x512xf32> to vector<8x128xf32>
    %58 = arith.negf %57 : vector<8x128xf32>
    %59 = math.exp %58 : vector<8x128xf32>
    %cst_26 = arith.constant 1.000000e+00 : f32
    %60 = vector.broadcast %cst_26 : f32 to vector<8x128xf32>
    %61 = arith.addf %60, %59 : vector<8x128xf32>
    %62 = arith.divf %60, %61 : vector<8x128xf32>
    %63 = vector.extract_strided_slice %50 {offsets = [0, 256], sizes = [8, 128], strides = [1, 1]} : vector<8x512xf32> to vector<8x128xf32>
    %64 = math.tanh %63 : vector<8x128xf32>
    %65 = vector.extract_strided_slice %50 {offsets = [0, 384], sizes = [8, 128], strides = [1, 1]} : vector<8x512xf32> to vector<8x128xf32>
    %66 = arith.negf %65 : vector<8x128xf32>
    %67 = math.exp %66 : vector<8x128xf32>
    %cst_27 = arith.constant 1.000000e+00 : f32
    %68 = vector.broadcast %cst_27 : f32 to vector<8x128xf32>
    %69 = arith.addf %68, %67 : vector<8x128xf32>
    %70 = arith.divf %68, %69 : vector<8x128xf32>
    %71 = arith.mulf %62, %38 : vector<8x128xf32>
    %72 = arith.mulf %56, %64 : vector<8x128xf32>
    %73 = arith.addf %71, %72 : vector<8x128xf32>
    %74 = math.tanh %73 : vector<8x128xf32>
    %75 = arith.mulf %70, %74 : vector<8x128xf32>
    %76 = arith.index_cast %c1_i32 : i32 to index
    %c0_28 = arith.constant 0 : index
    %c0_29 = arith.constant 0 : index
    %77 = vector.load %arg5[%76, %c0_28, %c0_29] : memref<8x8x128xf32, #tpu.memory_space<vmem>>, vector<1x8x128xf32>
    %78 = vector.shape_cast %77 : vector<1x8x128xf32> to vector<8x128xf32>
    %79 = vector.shape_cast %75 : vector<8x128xf32> to vector<1x8x128xf32>
    tpu.vector_store %arg5[%76, %c0_28, %c0_29], %79 {strides = array<i32>} : memref<8x8x128xf32, #tpu.memory_space<vmem>>, vector<1x8x128xf32>,
    %c2_i32 = arith.constant 2 : i32
    %80 = arith.index_cast %c2_i32 : i32 to index
    %c0_30 = arith.constant 0 : index
    %c0_31 = arith.constant 0 : index
    %81 = vector.load %arg8[%80, %c0_30, %c0_31] : memref<8x8x512xf32, #tpu.memory_space<vmem>>, vector<1x8x512xf32>
    %82 = vector.shape_cast %81 : vector<1x8x512xf32> to vector<8x512xf32>
    %c0_32 = arith.constant 0 : index
    %c0_33 = arith.constant 0 : index
    %83 = vector.load %arg3[%c0_32, %c0_33] : memref<128x512xf32, #tpu.memory_space<vmem>>, vector<128x512xf32>
    %cst_34 = arith.constant dense<0.000000e+00> : vector<8x512xf32>
    %84 = tpu.matmul %75, %83, %cst_34 {dimension_numbers = #tpu.dot_dimension_numbers<[1], [0], [0], [1], [0, 0, 1, 1], [], []>} : vector<8x128xf32>, vector<128x512xf32>, vector<8x512xf32> -> vector<8x512xf32>
    %85 = arith.addf %82, %84 : vector<8x512xf32>
    %86 = vector.extract_strided_slice %85 {offsets = [0, 0], sizes = [8, 128], strides = [1, 1]} : vector<8x512xf32> to vector<8x128xf32>
    %87 = arith.negf %86 : vector<8x128xf32>
    %88 = math.exp %87 : vector<8x128xf32>
    %cst_35 = arith.constant 1.000000e+00 : f32
    %89 = vector.broadcast %cst_35 : f32 to vector<8x128xf32>
    %90 = arith.addf %89, %88 : vector<8x128xf32>
    %91 = arith.divf %89, %90 : vector<8x128xf32>
    %92 = vector.extract_strided_slice %85 {offsets = [0, 128], sizes = [8, 128], strides = [1, 1]} : vector<8x512xf32> to vector<8x128xf32>
    %93 = arith.negf %92 : vector<8x128xf32>
    %94 = math.exp %93 : vector<8x128xf32>
    %cst_36 = arith.constant 1.000000e+00 : f32
    %95 = vector.broadcast %cst_36 : f32 to vector<8x128xf32>
    %96 = arith.addf %95, %94 : vector<8x128xf32>
    %97 = arith.divf %95, %96 : vector<8x128xf32>
    %98 = vector.extract_strided_slice %85 {offsets = [0, 256], sizes = [8, 128], strides = [1, 1]} : vector<8x512xf32> to vector<8x128xf32>
    %99 = math.tanh %98 : vector<8x128xf32>
    %100 = vector.extract_strided_slice %85 {offsets = [0, 384], sizes = [8, 128], strides = [1, 1]} : vector<8x512xf32> to vector<8x128xf32>
    %101 = arith.negf %100 : vector<8x128xf32>
    %102 = math.exp %101 : vector<8x128xf32>
    %cst_37 = arith.constant 1.000000e+00 : f32
    %103 = vector.broadcast %cst_37 : f32 to vector<8x128xf32>
    %104 = arith.addf %103, %102 : vector<8x128xf32>
    %105 = arith.divf %103, %104 : vector<8x128xf32>
    %106 = arith.mulf %97, %73 : vector<8x128xf32>
    %107 = arith.mulf %91, %99 : vector<8x128xf32>
    %108 = arith.addf %106, %107 : vector<8x128xf32>
    %109 = math.tanh %108 : vector<8x128xf32>
    %110 = arith.mulf %105, %109 : vector<8x128xf32>
    %111 = arith.index_cast %c2_i32 : i32 to index
    %c0_38 = arith.constant 0 : index
    %c0_39 = arith.constant 0 : index
    %112 = vector.load %arg5[%111, %c0_38, %c0_39] : memref<8x8x128xf32, #tpu.memory_space<vmem>>, vector<1x8x128xf32>
    %113 = vector.shape_cast %112 : vector<1x8x128xf32> to vector<8x128xf32>
    %114 = vector.shape_cast %110 : vector<8x128xf32> to vector<1x8x128xf32>
    tpu.vector_store %arg5[%111, %c0_38, %c0_39], %114 {strides = array<i32>} : memref<8x8x128xf32, #tpu.memory_space<vmem>>, vector<1x8x128xf32>,
    %c3_i32 = arith.constant 3 : i32
    %115 = arith.index_cast %c3_i32 : i32 to index
    %c0_40 = arith.constant 0 : index
    %c0_41 = arith.constant 0 : index
    %116 = vector.load %arg8[%115, %c0_40, %c0_41] : memref<8x8x512xf32, #tpu.memory_space<vmem>>, vector<1x8x512xf32>
    %117 = vector.shape_cast %116 : vector<1x8x512xf32> to vector<8x512xf32>
    %c0_42 = arith.constant 0 : index
    %c0_43 = arith.constant 0 : index
    %118 = vector.load %arg3[%c0_42, %c0_43] : memref<128x512xf32, #tpu.memory_space<vmem>>, vector<128x512xf32>
    %cst_44 = arith.constant dense<0.000000e+00> : vector<8x512xf32>
    %119 = tpu.matmul %110, %118, %cst_44 {dimension_numbers = #tpu.dot_dimension_numbers<[1], [0], [0], [1], [0, 0, 1, 1], [], []>} : vector<8x128xf32>, vector<128x512xf32>, vector<8x512xf32> -> vector<8x512xf32>
    %120 = arith.addf %117, %119 : vector<8x512xf32>
    %121 = vector.extract_strided_slice %120 {offsets = [0, 0], sizes = [8, 128], strides = [1, 1]} : vector<8x512xf32> to vector<8x128xf32>
    %122 = arith.negf %121 : vector<8x128xf32>
    %123 = math.exp %122 : vector<8x128xf32>
    %cst_45 = arith.constant 1.000000e+00 : f32
    %124 = vector.broadcast %cst_45 : f32 to vector<8x128xf32>
    %125 = arith.addf %124, %123 : vector<8x128xf32>
    %126 = arith.divf %124, %125 : vector<8x128xf32>
    %127 = vector.extract_strided_slice %120 {offsets = [0, 128], sizes = [8, 128], strides = [1, 1]} : vector<8x512xf32> to vector<8x128xf32>
    %128 = arith.negf %127 : vector<8x128xf32>
    %129 = math.exp %128 : vector<8x128xf32>
    %cst_46 = arith.constant 1.000000e+00 : f32
    %130 = vector.broadcast %cst_46 : f32 to vector<8x128xf32>
    %131 = arith.addf %130, %129 : vector<8x128xf32>
    %132 = arith.divf %130, %131 : vector<8x128xf32>
    %133 = vector.extract_strided_slice %120 {offsets = [0, 256], sizes = [8, 128], strides = [1, 1]} : vector<8x512xf32> to vector<8x128xf32>
    %134 = math.tanh %133 : vector<8x128xf32>
    %135 = vector.extract_strided_slice %120 {offsets = [0, 384], sizes = [8, 128], strides = [1, 1]} : vector<8x512xf32> to vector<8x128xf32>
    %136 = arith.negf %135 : vector<8x128xf32>
    %137 = math.exp %136 : vector<8x128xf32>
    %cst_47 = arith.constant 1.000000e+00 : f32
    %138 = vector.broadcast %cst_47 : f32 to vector<8x128xf32>
    %139 = arith.addf %138, %137 : vector<8x128xf32>
    %140 = arith.divf %138, %139 : vector<8x128xf32>
    %141 = arith.mulf %132, %108 : vector<8x128xf32>
    %142 = arith.mulf %126, %134 : vector<8x128xf32>
    %143 = arith.addf %141, %142 : vector<8x128xf32>
    %144 = math.tanh %143 : vector<8x128xf32>
    %145 = arith.mulf %140, %144 : vector<8x128xf32>
    %146 = arith.index_cast %c3_i32 : i32 to index
    %c0_48 = arith.constant 0 : index
    %c0_49 = arith.constant 0 : index
    %147 = vector.load %arg5[%146, %c0_48, %c0_49] : memref<8x8x128xf32, #tpu.memory_space<vmem>>, vector<1x8x128xf32>
    %148 = vector.shape_cast %147 : vector<1x8x128xf32> to vector<8x128xf32>
    %149 = vector.shape_cast %145 : vector<8x128xf32> to vector<1x8x128xf32>
    tpu.vector_store %arg5[%146, %c0_48, %c0_49], %149 {strides = array<i32>} : memref<8x8x128xf32, #tpu.memory_space<vmem>>, vector<1x8x128xf32>,
    %c4_i32 = arith.constant 4 : i32
    %150 = arith.index_cast %c4_i32 : i32 to index
    %c0_50 = arith.constant 0 : index
    %c0_51 = arith.constant 0 : index
    %151 = vector.load %arg8[%150, %c0_50, %c0_51] : memref<8x8x512xf32, #tpu.memory_space<vmem>>, vector<1x8x512xf32>
    %152 = vector.shape_cast %151 : vector<1x8x512xf32> to vector<8x512xf32>
    %c0_52 = arith.constant 0 : index
    %c0_53 = arith.constant 0 : index
    %153 = vector.load %arg3[%c0_52, %c0_53] : memref<128x512xf32, #tpu.memory_space<vmem>>, vector<128x512xf32>
    %cst_54 = arith.constant dense<0.000000e+00> : vector<8x512xf32>
    %154 = tpu.matmul %145, %153, %cst_54 {dimension_numbers = #tpu.dot_dimension_numbers<[1], [0], [0], [1], [0, 0, 1, 1], [], []>} : vector<8x128xf32>, vector<128x512xf32>, vector<8x512xf32> -> vector<8x512xf32>
    %155 = arith.addf %152, %154 : vector<8x512xf32>
    %156 = vector.extract_strided_slice %155 {offsets = [0, 0], sizes = [8, 128], strides = [1, 1]} : vector<8x512xf32> to vector<8x128xf32>
    %157 = arith.negf %156 : vector<8x128xf32>
    %158 = math.exp %157 : vector<8x128xf32>
    %cst_55 = arith.constant 1.000000e+00 : f32
    %159 = vector.broadcast %cst_55 : f32 to vector<8x128xf32>
    %160 = arith.addf %159, %158 : vector<8x128xf32>
    %161 = arith.divf %159, %160 : vector<8x128xf32>
    %162 = vector.extract_strided_slice %155 {offsets = [0, 128], sizes = [8, 128], strides = [1, 1]} : vector<8x512xf32> to vector<8x128xf32>
    %163 = arith.negf %162 : vector<8x128xf32>
    %164 = math.exp %163 : vector<8x128xf32>
    %cst_56 = arith.constant 1.000000e+00 : f32
    %165 = vector.broadcast %cst_56 : f32 to vector<8x128xf32>
    %166 = arith.addf %165, %164 : vector<8x128xf32>
    %167 = arith.divf %165, %166 : vector<8x128xf32>
    %168 = vector.extract_strided_slice %155 {offsets = [0, 256], sizes = [8, 128], strides = [1, 1]} : vector<8x512xf32> to vector<8x128xf32>
    %169 = math.tanh %168 : vector<8x128xf32>
    %170 = vector.extract_strided_slice %155 {offsets = [0, 384], sizes = [8, 128], strides = [1, 1]} : vector<8x512xf32> to vector<8x128xf32>
    %171 = arith.negf %170 : vector<8x128xf32>
    %172 = math.exp %171 : vector<8x128xf32>
    %cst_57 = arith.constant 1.000000e+00 : f32
    %173 = vector.broadcast %cst_57 : f32 to vector<8x128xf32>
    %174 = arith.addf %173, %172 : vector<8x128xf32>
    %175 = arith.divf %173, %174 : vector<8x128xf32>
    %176 = arith.mulf %167, %143 : vector<8x128xf32>
    %177 = arith.mulf %161, %169 : vector<8x128xf32>
    %178 = arith.addf %176, %177 : vector<8x128xf32>
    %179 = math.tanh %178 : vector<8x128xf32>
    %180 = arith.mulf %175, %179 : vector<8x128xf32>
    %181 = arith.index_cast %c4_i32 : i32 to index
    %c0_58 = arith.constant 0 : index
    %c0_59 = arith.constant 0 : index
    %182 = vector.load %arg5[%181, %c0_58, %c0_59] : memref<8x8x128xf32, #tpu.memory_space<vmem>>, vector<1x8x128xf32>
    %183 = vector.shape_cast %182 : vector<1x8x128xf32> to vector<8x128xf32>
    %184 = vector.shape_cast %180 : vector<8x128xf32> to vector<1x8x128xf32>
    tpu.vector_store %arg5[%181, %c0_58, %c0_59], %184 {strides = array<i32>} : memref<8x8x128xf32, #tpu.memory_space<vmem>>, vector<1x8x128xf32>,
    %c5_i32 = arith.constant 5 : i32
    %185 = arith.index_cast %c5_i32 : i32 to index
    %c0_60 = arith.constant 0 : index
    %c0_61 = arith.constant 0 : index
    %186 = vector.load %arg8[%185, %c0_60, %c0_61] : memref<8x8x512xf32, #tpu.memory_space<vmem>>, vector<1x8x512xf32>
    %187 = vector.shape_cast %186 : vector<1x8x512xf32> to vector<8x512xf32>
    %c0_62 = arith.constant 0 : index
    %c0_63 = arith.constant 0 : index
    %188 = vector.load %arg3[%c0_62, %c0_63] : memref<128x512xf32, #tpu.memory_space<vmem>>, vector<128x512xf32>
    %cst_64 = arith.constant dense<0.000000e+00> : vector<8x512xf32>
    %189 = tpu.matmul %180, %188, %cst_64 {dimension_numbers = #tpu.dot_dimension_numbers<[1], [0], [0], [1], [0, 0, 1, 1], [], []>} : vector<8x128xf32>, vector<128x512xf32>, vector<8x512xf32> -> vector<8x512xf32>
    %190 = arith.addf %187, %189 : vector<8x512xf32>
    %191 = vector.extract_strided_slice %190 {offsets = [0, 0], sizes = [8, 128], strides = [1, 1]} : vector<8x512xf32> to vector<8x128xf32>
    %192 = arith.negf %191 : vector<8x128xf32>
    %193 = math.exp %192 : vector<8x128xf32>
    %cst_65 = arith.constant 1.000000e+00 : f32
    %194 = vector.broadcast %cst_65 : f32 to vector<8x128xf32>
    %195 = arith.addf %194, %193 : vector<8x128xf32>
    %196 = arith.divf %194, %195 : vector<8x128xf32>
    %197 = vector.extract_strided_slice %190 {offsets = [0, 128], sizes = [8, 128], strides = [1, 1]} : vector<8x512xf32> to vector<8x128xf32>
    %198 = arith.negf %197 : vector<8x128xf32>
    %199 = math.exp %198 : vector<8x128xf32>
    %cst_66 = arith.constant 1.000000e+00 : f32
    %200 = vector.broadcast %cst_66 : f32 to vector<8x128xf32>
    %201 = arith.addf %200, %199 : vector<8x128xf32>
    %202 = arith.divf %200, %201 : vector<8x128xf32>
    %203 = vector.extract_strided_slice %190 {offsets = [0, 256], sizes = [8, 128], strides = [1, 1]} : vector<8x512xf32> to vector<8x128xf32>
    %204 = math.tanh %203 : vector<8x128xf32>
    %205 = vector.extract_strided_slice %190 {offsets = [0, 384], sizes = [8, 128], strides = [1, 1]} : vector<8x512xf32> to vector<8x128xf32>
    %206 = arith.negf %205 : vector<8x128xf32>
    %207 = math.exp %206 : vector<8x128xf32>
    %cst_67 = arith.constant 1.000000e+00 : f32
    %208 = vector.broadcast %cst_67 : f32 to vector<8x128xf32>
    %209 = arith.addf %208, %207 : vector<8x128xf32>
    %210 = arith.divf %208, %209 : vector<8x128xf32>
    %211 = arith.mulf %202, %178 : vector<8x128xf32>
    %212 = arith.mulf %196, %204 : vector<8x128xf32>
    %213 = arith.addf %211, %212 : vector<8x128xf32>
    %214 = math.tanh %213 : vector<8x128xf32>
    %215 = arith.mulf %210, %214 : vector<8x128xf32>
    %216 = arith.index_cast %c5_i32 : i32 to index
    %c0_68 = arith.constant 0 : index
    %c0_69 = arith.constant 0 : index
    %217 = vector.load %arg5[%216, %c0_68, %c0_69] : memref<8x8x128xf32, #tpu.memory_space<vmem>>, vector<1x8x128xf32>
    %218 = vector.shape_cast %217 : vector<1x8x128xf32> to vector<8x128xf32>
    %219 = vector.shape_cast %215 : vector<8x128xf32> to vector<1x8x128xf32>
    tpu.vector_store %arg5[%216, %c0_68, %c0_69], %219 {strides = array<i32>} : memref<8x8x128xf32, #tpu.memory_space<vmem>>, vector<1x8x128xf32>,
    %c6_i32 = arith.constant 6 : i32
    %220 = arith.index_cast %c6_i32 : i32 to index
    %c0_70 = arith.constant 0 : index
    %c0_71 = arith.constant 0 : index
    %221 = vector.load %arg8[%220, %c0_70, %c0_71] : memref<8x8x512xf32, #tpu.memory_space<vmem>>, vector<1x8x512xf32>
    %222 = vector.shape_cast %221 : vector<1x8x512xf32> to vector<8x512xf32>
    %c0_72 = arith.constant 0 : index
    %c0_73 = arith.constant 0 : index
    %223 = vector.load %arg3[%c0_72, %c0_73] : memref<128x512xf32, #tpu.memory_space<vmem>>, vector<128x512xf32>
    %cst_74 = arith.constant dense<0.000000e+00> : vector<8x512xf32>
    %224 = tpu.matmul %215, %223, %cst_74 {dimension_numbers = #tpu.dot_dimension_numbers<[1], [0], [0], [1], [0, 0, 1, 1], [], []>} : vector<8x128xf32>, vector<128x512xf32>, vector<8x512xf32> -> vector<8x512xf32>
    %225 = arith.addf %222, %224 : vector<8x512xf32>
    %226 = vector.extract_strided_slice %225 {offsets = [0, 0], sizes = [8, 128], strides = [1, 1]} : vector<8x512xf32> to vector<8x128xf32>
    %227 = arith.negf %226 : vector<8x128xf32>
    %228 = math.exp %227 : vector<8x128xf32>
    %cst_75 = arith.constant 1.000000e+00 : f32
    %229 = vector.broadcast %cst_75 : f32 to vector<8x128xf32>
    %230 = arith.addf %229, %228 : vector<8x128xf32>
    %231 = arith.divf %229, %230 : vector<8x128xf32>
    %232 = vector.extract_strided_slice %225 {offsets = [0, 128], sizes = [8, 128], strides = [1, 1]} : vector<8x512xf32> to vector<8x128xf32>
    %233 = arith.negf %232 : vector<8x128xf32>
    %234 = math.exp %233 : vector<8x128xf32>
    %cst_76 = arith.constant 1.000000e+00 : f32
    %235 = vector.broadcast %cst_76 : f32 to vector<8x128xf32>
    %236 = arith.addf %235, %234 : vector<8x128xf32>
    %237 = arith.divf %235, %236 : vector<8x128xf32>
    %238 = vector.extract_strided_slice %225 {offsets = [0, 256], sizes = [8, 128], strides = [1, 1]} : vector<8x512xf32> to vector<8x128xf32>
    %239 = math.tanh %238 : vector<8x128xf32>
    %240 = vector.extract_strided_slice %225 {offsets = [0, 384], sizes = [8, 128], strides = [1, 1]} : vector<8x512xf32> to vector<8x128xf32>
    %241 = arith.negf %240 : vector<8x128xf32>
    %242 = math.exp %241 : vector<8x128xf32>
    %cst_77 = arith.constant 1.000000e+00 : f32
    %243 = vector.broadcast %cst_77 : f32 to vector<8x128xf32>
    %244 = arith.addf %243, %242 : vector<8x128xf32>
    %245 = arith.divf %243, %244 : vector<8x128xf32>
    %246 = arith.mulf %237, %213 : vector<8x128xf32>
    %247 = arith.mulf %231, %239 : vector<8x128xf32>
    %248 = arith.addf %246, %247 : vector<8x128xf32>
    %249 = math.tanh %248 : vector<8x128xf32>
    %250 = arith.mulf %245, %249 : vector<8x128xf32>
    %251 = arith.index_cast %c6_i32 : i32 to index
    %c0_78 = arith.constant 0 : index
    %c0_79 = arith.constant 0 : index
    %252 = vector.load %arg5[%251, %c0_78, %c0_79] : memref<8x8x128xf32, #tpu.memory_space<vmem>>, vector<1x8x128xf32>
    %253 = vector.shape_cast %252 : vector<1x8x128xf32> to vector<8x128xf32>
    %254 = vector.shape_cast %250 : vector<8x128xf32> to vector<1x8x128xf32>
    tpu.vector_store %arg5[%251, %c0_78, %c0_79], %254 {strides = array<i32>} : memref<8x8x128xf32, #tpu.memory_space<vmem>>, vector<1x8x128xf32>,
    %c7_i32 = arith.constant 7 : i32
    %255 = arith.index_cast %c7_i32 : i32 to index
    %c0_80 = arith.constant 0 : index
    %c0_81 = arith.constant 0 : index
    %256 = vector.load %arg8[%255, %c0_80, %c0_81] : memref<8x8x512xf32, #tpu.memory_space<vmem>>, vector<1x8x512xf32>
    %257 = vector.shape_cast %256 : vector<1x8x512xf32> to vector<8x512xf32>
    %c0_82 = arith.constant 0 : index
    %c0_83 = arith.constant 0 : index
    %258 = vector.load %arg3[%c0_82, %c0_83] : memref<128x512xf32, #tpu.memory_space<vmem>>, vector<128x512xf32>
    %cst_84 = arith.constant dense<0.000000e+00> : vector<8x512xf32>
    %259 = tpu.matmul %250, %258, %cst_84 {dimension_numbers = #tpu.dot_dimension_numbers<[1], [0], [0], [1], [0, 0, 1, 1], [], []>} : vector<8x128xf32>, vector<128x512xf32>, vector<8x512xf32> -> vector<8x512xf32>
    %260 = arith.addf %257, %259 : vector<8x512xf32>
    %261 = vector.extract_strided_slice %260 {offsets = [0, 0], sizes = [8, 128], strides = [1, 1]} : vector<8x512xf32> to vector<8x128xf32>
    %262 = arith.negf %261 : vector<8x128xf32>
    %263 = math.exp %262 : vector<8x128xf32>
    %cst_85 = arith.constant 1.000000e+00 : f32
    %264 = vector.broadcast %cst_85 : f32 to vector<8x128xf32>
    %265 = arith.addf %264, %263 : vector<8x128xf32>
    %266 = arith.divf %264, %265 : vector<8x128xf32>
    %267 = vector.extract_strided_slice %260 {offsets = [0, 128], sizes = [8, 128], strides = [1, 1]} : vector<8x512xf32> to vector<8x128xf32>
    %268 = arith.negf %267 : vector<8x128xf32>
    %269 = math.exp %268 : vector<8x128xf32>
    %cst_86 = arith.constant 1.000000e+00 : f32
    %270 = vector.broadcast %cst_86 : f32 to vector<8x128xf32>
    %271 = arith.addf %270, %269 : vector<8x128xf32>
    %272 = arith.divf %270, %271 : vector<8x128xf32>
    %273 = vector.extract_strided_slice %260 {offsets = [0, 256], sizes = [8, 128], strides = [1, 1]} : vector<8x512xf32> to vector<8x128xf32>
    %274 = math.tanh %273 : vector<8x128xf32>
    %275 = vector.extract_strided_slice %260 {offsets = [0, 384], sizes = [8, 128], strides = [1, 1]} : vector<8x512xf32> to vector<8x128xf32>
    %276 = arith.negf %275 : vector<8x128xf32>
    %277 = math.exp %276 : vector<8x128xf32>
    %cst_87 = arith.constant 1.000000e+00 : f32
    %278 = vector.broadcast %cst_87 : f32 to vector<8x128xf32>
    %279 = arith.addf %278, %277 : vector<8x128xf32>
    %280 = arith.divf %278, %279 : vector<8x128xf32>
    %281 = arith.mulf %272, %248 : vector<8x128xf32>
    %282 = arith.mulf %266, %274 : vector<8x128xf32>
    %283 = arith.addf %281, %282 : vector<8x128xf32>
    %284 = math.tanh %283 : vector<8x128xf32>
    %285 = arith.mulf %280, %284 : vector<8x128xf32>
    %286 = arith.index_cast %c7_i32 : i32 to index
    %c0_88 = arith.constant 0 : index
    %c0_89 = arith.constant 0 : index
    %287 = vector.load %arg5[%286, %c0_88, %c0_89] : memref<8x8x128xf32, #tpu.memory_space<vmem>>, vector<1x8x128xf32>
    %288 = vector.shape_cast %287 : vector<1x8x128xf32> to vector<8x128xf32>
    %289 = vector.shape_cast %285 : vector<8x128xf32> to vector<1x8x128xf32>
    tpu.vector_store %arg5[%286, %c0_88, %c0_89], %289 {strides = array<i32>} : memref<8x8x128xf32, #tpu.memory_space<vmem>>, vector<1x8x128xf32>,
    %c8_i32 = arith.constant 8 : i32
    %c0_90 = arith.constant 0 : index
    %c0_91 = arith.constant 0 : index
    %290 = vector.load %arg6[%c0_90, %c0_91] : memref<8x128xf32, #tpu.memory_space<vmem>>, vector<8x128xf32>
    tpu.vector_store %arg6[%c0_90, %c0_91], %285 {strides = array<i32>} : memref<8x128xf32, #tpu.memory_space<vmem>>, vector<8x128xf32>,
    %c0_92 = arith.constant 0 : index
    %c0_93 = arith.constant 0 : index
    %291 = vector.load %arg7[%c0_92, %c0_93] : memref<8x128xf32, #tpu.memory_space<vmem>>, vector<8x128xf32>
    tpu.vector_store %arg7[%c0_92, %c0_93], %283 {strides = array<i32>} : memref<8x128xf32, #tpu.memory_space<vmem>>, vector<8x128xf32>,
    return
  }
  func.func @transform_0(%arg0: i32) -> (i32, i32, i32) {
    %c0_i32 = arith.constant 0 : i32
    %c0_i32_0 = arith.constant 0 : i32
    %c0_i32_1 = arith.constant 0 : i32
    return %c0_i32, %arg0, %c0_i32_0 : i32, i32, i32
  }
  func.func @transform_1(%arg0: i32) -> (i32, i32) {
    %c0_i32 = arith.constant 0 : i32
    %c0_i32_0 = arith.constant 0 : i32
    %c0_i32_1 = arith.constant 0 : i32
    return %c0_i32, %c0_i32_0 : i32, i32
  }
  func.func @transform_2(%arg0: i32) -> (i32, i32) {
    %c0_i32 = arith.constant 0 : i32
    %c0_i32_0 = arith.constant 0 : i32
    %c0_i32_1 = arith.constant 0 : i32
    return %c0_i32, %c0_i32_0 : i32, i32
  }
  func.func @transform_3(%arg0: i32) -> (i32, i32) {
    %c0_i32 = arith.constant 0 : i32
    %c0_i32_0 = arith.constant 0 : i32
    %c0_i32_1 = arith.constant 0 : i32
    return %c0_i32, %c0_i32_0 : i32, i32
  }
  func.func @transform_4(%arg0: i32) -> (i32, i32, i32) {
    %c0_i32 = arith.constant 0 : i32
    %c0_i32_0 = arith.constant 0 : i32
    %c0_i32_1 = arith.constant 0 : i32
    return %c0_i32, %arg0, %c0_i32_0 : i32, i32, i32
  }
  func.func @transform_5(%arg0: i32) -> (i32, i32) {
    %c0_i32 = arith.constant 0 : i32
    %c0_i32_0 = arith.constant 0 : i32
    return %arg0, %c0_i32 : i32, i32
  }
  func.func @transform_6(%arg0: i32) -> (i32, i32) {
    %c0_i32 = arith.constant 0 : i32
    %c0_i32_0 = arith.constant 0 : i32
    return %arg0, %c0_i32 : i32, i32
  }
}

</mosaic_0001>

<llo_original>
// kernel: tpu_custom_call.1
$region0: #{tpu_custom_call.1}
  #allocation0 [shape = 'u32[]', space=smem, size = 0x4, offset = 0x4, fixed_abs, tag = 'smem constant byte address 0x4 - core index']
  #allocation1 [shape = 'u32[72,128]{1,0:T(1,128)}', space=vmem, size = 0x9000, scoped, tag = 'internal scratch']
  #allocation2 [shape = 'f32[8,8,512]{2,1,0:T(8,128)}', space=vmem, size = 0x20000, scoped, tag = 'scratch operand']
  %s0 = inlined_call_operand.hbm [shape: f32[8,8,128], index: 0, kind: input, shape index: {}]
  %s1 = inlined_call_operand.hbm [shape: f32[128,512], index: 1, kind: input, shape index: {}]
  %s2 = inlined_call_operand.hbm [shape: f32[128,512], index: 2, kind: input, shape index: {}]
  %s3 = inlined_call_operand.hbm [shape: f32[1,512], index: 3, kind: input, shape index: {}]
  %s4 = inlined_call_operand.hbm [shape: f32[8,8,128], index: 4, kind: output, shape index: {0}]
  %s5 = inlined_call_operand.hbm [shape: f32[8,128], index: 5, kind: output, shape index: {1}]
  %s6 = inlined_call_operand.hbm [shape: f32[8,128], index: 6, kind: output, shape index: {2}]
  %7 = xla_tuple %s4, %s5, %s6
  %s8 = sld [smem:[#allocation0]]
  $region58: #{tpu_custom_call.1} parent=0
    _
  %s10 = ssub.s32 1, %s8
  %s11 = scalar_select 0, %s10, %s8
  $region1: #{tpu_custom_call.1} parent=0
    #allocation3 [shape = 'u8[32768]{0}', space=vmem, size = 0x8000, scoped, tag = 'input window, operand 0, single buffered']
    #allocation4 [shape = 's32[1]{0}', space=sflag, size = 0x4, scoped, tag = 'scoped memory for tpu_custom_call.1']
    #allocation5 [shape = 's32[1]{0}', space=sflag, size = 0x4, scoped, tag = 'scoped memory for tpu_custom_call.1']
    #allocation6 [shape = 'u8[262144]{0}', space=vmem, size = 0x40000, scoped, tag = 'input window, operand 1, single buffered']
    #allocation7 [shape = 's32[1]{0}', space=sflag, size = 0x4, scoped, tag = 'scoped memory for tpu_custom_call.1']
    #allocation8 [shape = 'u8[262144]{0}', space=vmem, size = 0x40000, scoped, tag = 'input window, operand 2, single buffered']
    #allocation9 [shape = 'u8[2048]{0}', space=vmem, size = 0x800, scoped, tag = 'input window, operand 3, single buffered']
    #allocation10 [shape = 's32[1]{0}', space=sflag, size = 0x4, scoped, tag = 'scoped memory for tpu_custom_call.1']
    #allocation11 [shape = 'u8[32768]{0}', space=vmem, size = 0x8000, scoped, tag = 'output window, operand 0, single buffered']
    #allocation12 [shape = 'u8[4096]{0}', space=vmem, size = 0x1000, scoped, tag = 'output window, operand 1, single buffered']
    #allocation13 [shape = 's32[1]{0}', space=sflag, size = 0x4, scoped, tag = 'scoped memory for tpu_custom_call.1']
    #allocation14 [shape = 'u8[4096]{0}', space=vmem, size = 0x1000, scoped, tag = 'output window, operand 2, single buffered']
    %12 = vsyncpa [#allocation4], 0
    %13 = vsyncpa [#allocation7], 0
    %14 = vsyncpa [#allocation10], 0
    %15 = vsyncpa [#allocation5], 0
    %16 = vsyncpa [#allocation13], 0
    // Predicated region
    $region2: #{tpu_custom_call.1} parent=1 // pred_check
      _
    $region3: #{tpu_custom_call.1} parent=1 // pred_check_branch
      %18 = sbr.rel (0) target = $region5
    $region4: #{tpu_custom_call.1} parent=1 // pred_region
      %20 = vsyncadd [#allocation4], 0
      %s21 = sshll.u32 %s0, 4
      %s22 = int_to_ptr.hbm [resolvable:$true] %s21
      %s23 = sshll.u32 [#allocation3], 4
      %s24 = int_to_ptr.vmem [resolvable:$true] %s23
      %29 = dma.hbm_to_vmem [thread:$0]  %s22, 1024, %s24, [#allocation4], 128, 128, 8
    $region5: #{tpu_custom_call.1} parent=1 // pred_fallthru
      _
    // Predicated region
    $region6: #{tpu_custom_call.1} parent=1 // pred_check
      _
    $region7: #{tpu_custom_call.1} parent=1 // pred_check_branch
      %31 = sbr.rel (0) target = $region9
    $region8: #{tpu_custom_call.1} parent=1 // pred_region
      %33 = vsyncadd [#allocation7], 0
      %s34 = sshll.u32 %s1, 4
      %s35 = int_to_ptr.hbm [resolvable:$true] %s34
      %s36 = sshll.u32 [#allocation6], 4
      %s37 = int_to_ptr.vmem [resolvable:$true] %s36
      %42 = dma.hbm_to_vmem [thread:$0]  %s35, 8192, %s37, [#allocation7], 512, 512, 32
    $region9: #{tpu_custom_call.1} parent=1 // pred_fallthru
      _
    // Predicated region
    $region10: #{tpu_custom_call.1} parent=1 // pred_check
      _
    $region11: #{tpu_custom_call.1} parent=1 // pred_check_branch
      %44 = sbr.rel (0) target = $region13
    $region12: #{tpu_custom_call.1} parent=1 // pred_region
      %46 = vsyncadd [#allocation7], 0
      %s47 = sshll.u32 %s2, 4
      %s48 = int_to_ptr.hbm [resolvable:$true] %s47
      %s49 = sshll.u32 [#allocation8], 4
      %s50 = int_to_ptr.vmem [resolvable:$true] %s49
      %55 = dma.hbm_to_vmem [thread:$0]  %s48, 8192, %s50, [#allocation7], 512, 512, 32
    $region13: #{tpu_custom_call.1} parent=1 // pred_fallthru
      _
    // Predicated region
    $region14: #{tpu_custom_call.1} parent=1 // pred_check
      _
    $region15: #{tpu_custom_call.1} parent=1 // pred_check_branch
      %57 = sbr.rel (0) target = $region17
    $region16: #{tpu_custom_call.1} parent=1 // pred_region
      %59 = vsyncadd [#allocation10], 0
      %s61 = sshll.u32 %s3, 4
      %s62 = int_to_ptr.hbm [resolvable:$true] %s61
      %s63 = sshll.u32 [#allocation9], 4
      %s64 = int_to_ptr.vmem [resolvable:$true] %s63
      %66 = dma.hbm_to_vmem [thread:$0]  %s62, 64, %s64, [#allocation10]
    $region17: #{tpu_custom_call.1} parent=1 // pred_fallthru
      _
    // Predicated region
    $region18: #{tpu_custom_call.1} parent=1 // pred_check
      _
    $region19: #{tpu_custom_call.1} parent=1 // pred_check_branch
      %68 = sbr.rel (0) target = $region21
    $region20: #{tpu_custom_call.1} parent=1 // pred_region
      %70 = dma.done [#allocation4], 1024
    $region21: #{tpu_custom_call.1} parent=1 // pred_fallthru
      _
    // Predicated region
    $region22: #{tpu_custom_call.1} parent=1 // pred_check
      _
    $region23: #{tpu_custom_call.1} parent=1 // pred_check_branch
      %72 = sbr.rel (0) target = $region25
    $region24: #{tpu_custom_call.1} parent=1 // pred_region
      %74 = dma.done [#allocation7], 8192
    $region25: #{tpu_custom_call.1} parent=1 // pred_fallthru
      _
    // Predicated region
    $region26: #{tpu_custom_call.1} parent=1 // pred_check
      _
    $region27: #{tpu_custom_call.1} parent=1 // pred_check_branch
      %76 = sbr.rel (0) target = $region29
    $region28: #{tpu_custom_call.1} parent=1 // pred_region
      %78 = dma.done [#allocation7], 8192
    $region29: #{tpu_custom_call.1} parent=1 // pred_fallthru
      _
    // Predicated region
    $region30: #{tpu_custom_call.1} parent=1 // pred_check
      _
    $region31: #{tpu_custom_call.1} parent=1 // pred_check_branch
      %80 = sbr.rel (0) target = $region33
    $region32: #{tpu_custom_call.1} parent=1 // pred_region
      %82 = dma.done [#allocation10], 64
    $region33: #{tpu_custom_call.1} parent=1 // pred_fallthru
      _
    %v83 = vld [vmem:[#allocation3] sm:$0xff]
    %v84 = vld [vmem:[#allocation3 + $0x8] sm:$0xff]
    %v85 = vld [vmem:[#allocation3 + $0x10] sm:$0xff]
    %v86 = vld [vmem:[#allocation3 + $0x18] sm:$0xff]
    %v87 = vld [vmem:[#allocation3 + $0x20] sm:$0xff]
    %v88 = vld [vmem:[#allocation3 + $0x28] sm:$0xff]
    %v89 = vld [vmem:[#allocation3 + $0x30] sm:$0xff]
    %v90 = vld [vmem:[#allocation3 + $0x38] sm:$0xff]
    %v91 = vld [vmem:[#allocation6] sm:$0xff]
    %v92 = vld [vmem:[#allocation6 + $0x8] sm:$0xff]
    %v93 = vld [vmem:[#allocation6 + $0x10] sm:$0xff]
    %v94 = vld [vmem:[#allocation6 + $0x18] sm:$0xff]
    %v95 = vld [vmem:[#allocation6 + $0x20] sm:$0xff]
    %v96 = vld [vmem:[#allocation6 + $0x28] sm:$0xff]
    %v97 = vld [vmem:[#allocation6 + $0x30] sm:$0xff]
    %v98 = vld [vmem:[#allocation6 + $0x38] sm:$0xff]
    %v99 = vld [vmem:[#allocation6 + $0x40] sm:$0xff]
    %v100 = vld [vmem:[#allocation6 + $0x48] sm:$0xff]
    %v101 = vld [vmem:[#allocation6 + $0x50] sm:$0xff]
    %v102 = vld [vmem:[#allocation6 + $0x58] sm:$0xff]
    %v103 = vld [vmem:[#allocation6 + $0x60] sm:$0xff]
    %v104 = vld [vmem:[#allocation6 + $0x68] sm:$0xff]
    %v105 = vld [vmem:[#allocation6 + $0x70] sm:$0xff]
    %v106 = vld [vmem:[#allocation6 + $0x78] sm:$0xff]
    %v107 = vld [vmem:[#allocation6 + $0x80] sm:$0xff]
    %v108 = vld [vmem:[#allocation6 + $0x88] sm:$0xff]
    %v109 = vld [vmem:[#allocation6 + $0x90] sm:$0xff]
    %v110 = vld [vmem:[#allocation6 + $0x98] sm:$0xff]
    %v111 = vld [vmem:[#allocation6 + $0xa0] sm:$0xff]
    %v112 = vld [vmem:[#allocation6 + $0xa8] sm:$0xff]
    %v113 = vld [vmem:[#allocation6 + $0xb0] sm:$0xff]
    %v114 = vld [vmem:[#allocation6 + $0xb8] sm:$0xff]
    %v115 = vld [vmem:[#allocation6 + $0xc0] sm:$0xff]
    %v116 = vld [vmem:[#allocation6 + $0xc8] sm:$0xff]
    %v117 = vld [vmem:[#allocation6 + $0xd0] sm:$0xff]
    %v118 = vld [vmem:[#allocation6 + $0xd8] sm:$0xff]
    %v119 = vld [vmem:[#allocation6 + $0xe0] sm:$0xff]
    %v120 = vld [vmem:[#allocation6 + $0xe8] sm:$0xff]
    %v121 = vld [vmem:[#allocation6 + $0xf0] sm:$0xff]
    %v122 = vld [vmem:[#allocation6 + $0xf8] sm:$0xff]
    %v123 = vld [vmem:[#allocation6 + $0x100] sm:$0xff]
    %v124 = vld [vmem:[#allocation6 + $0x108] sm:$0xff]
    %v125 = vld [vmem:[#allocation6 + $0x110] sm:$0xff]
    %v126 = vld [vmem:[#allocation6 + $0x118] sm:$0xff]
    %v127 = vld [vmem:[#allocation6 + $0x120] sm:$0xff]
    %v128 = vld [vmem:[#allocation6 + $0x128] sm:$0xff]
    %v129 = vld [vmem:[#allocation6 + $0x130] sm:$0xff]
    %v130 = vld [vmem:[#allocation6 + $0x138] sm:$0xff]
    %v131 = vld [vmem:[#allocation6 + $0x140] sm:$0xff]
    %v132 = vld [vmem:[#allocation6 + $0x148] sm:$0xff]
    %v133 = vld [vmem:[#allocation6 + $0x150] sm:$0xff]
    %v134 = vld [vmem:[#allocation6 + $0x158] sm:$0xff]
    %v135 = vld [vmem:[#allocation6 + $0x160] sm:$0xff]
    %v136 = vld [vmem:[#allocation6 + $0x168] sm:$0xff]
    %v137 = vld [vmem:[#allocation6 + $0x170] sm:$0xff]
    %v138 = vld [vmem:[#allocation6 + $0x178] sm:$0xff]
    %v139 = vld [vmem:[#allocation6 + $0x180] sm:$0xff]
    %v140 = vld [vmem:[#allocation6 + $0x188] sm:$0xff]
    %v141 = vld [vmem:[#allocation6 + $0x190] sm:$0xff]
    %v142 = vld [vmem:[#allocation6 + $0x198] sm:$0xff]
    %v143 = vld [vmem:[#allocation6 + $0x1a0] sm:$0xff]
    %v144 = vld [vmem:[#allocation6 + $0x1a8] sm:$0xff]
    %v145 = vld [vmem:[#allocation6 + $0x1b0] sm:$0xff]
    %v146 = vld [vmem:[#allocation6 + $0x1b8] sm:$0xff]
    %v147 = vld [vmem:[#allocation6 + $0x1c0] sm:$0xff]
    %v148 = vld [vmem:[#allocation6 + $0x1c8] sm:$0xff]
    %v149 = vld [vmem:[#allocation6 + $0x1d0] sm:$0xff]
    %v150 = vld [vmem:[#allocation6 + $0x1d8] sm:$0xff]
    %v151 = vld [vmem:[#allocation6 + $0x1e0] sm:$0xff]
    %v152 = vld [vmem:[#allocation6 + $0x1e8] sm:$0xff]
    %v153 = vld [vmem:[#allocation6 + $0x1f0] sm:$0xff]
    %v154 = vld [vmem:[#allocation6 + $0x1f8] sm:$0xff]
    %v155 = vld [vmem:[#allocation9] sm:$0xf]
    %v157 = vperm.slane %v155, 0
    %v158 = vperm.slane %v155, 1
    %v159 = vperm.slane %v155, 2
    %v160 = vperm.slane %v155, 3
    %165 = vmatpush.msra.mxu0 %v151
    %166 = vmatpush.msra.mxu0 %v147
    %167 = vmatpush.msra.mxu0 %v143
    %168 = vmatpush.msra.mxu0 %v139
    %169 = vmatpush.msra.mxu0 %v135
    %170 = vmatpush.msra.mxu0 %v131
    %171 = vmatpush.msra.mxu0 %v127
    %172 = vmatpush.msra.mxu0 %v123
    %173 = vmatpush.msra.mxu0 %v119
    %174 = vmatpush.msra.mxu0 %v115
    %175 = vmatpush.msra.mxu0 %v111
    %176 = vmatpush.msra.mxu0 %v107
    %177 = vmatpush.msra.mxu0 %v103
    %178 = vmatpush.msra.mxu0 %v99
    %179 = vmatpush.msra.mxu0 %v95
    %180 = vmatpush.msra.mxu0 %v91
    %181 = vmatmul.f32.gmra.mxu0 %v83
    %v182 = vpop.f32.mrf.mxu0
    %v183 = vadd.f32 %v157, %v182
    %184 = vmatmul.f32.gmra.mxu0 %v84
    %v185 = vpop.f32.mrf.mxu0
    %v186 = vadd.f32 %v157, %v185
    %187 = vmatmul.f32.gmra.mxu0 %v85
    %v188 = vpop.f32.mrf.mxu0
    %v189 = vadd.f32 %v157, %v188
    %190 = vmatmul.f32.gmra.mxu0 %v86
    %v191 = vpop.f32.mrf.mxu0
    %v192 = vadd.f32 %v157, %v191
    %193 = vmatmul.f32.gmra.mxu0 %v87
    %v194 = vpop.f32.mrf.mxu0
    %v195 = vadd.f32 %v157, %v194
    %196 = vmatmul.f32.gmra.mxu0 %v88
    %v197 = vpop.f32.mrf.mxu0
    %v198 = vadd.f32 %v157, %v197
    %199 = vmatmul.f32.gmra.mxu0 %v89
    %v200 = vpop.f32.mrf.mxu0
    %v201 = vadd.f32 %v157, %v200
    %202 = vmatmul.f32.gmra.mxu0 %v90
    %v203 = vpop.f32.mrf.mxu0
    %v204 = vadd.f32 %v157, %v203
    %205 = vdwg.mxu0
    %206 = vmatpush.msra.mxu0 %v152
    %207 = vmatpush.msra.mxu0 %v148
    %208 = vmatpush.msra.mxu0 %v144
    %209 = vmatpush.msra.mxu0 %v140
    %210 = vmatpush.msra.mxu0 %v136
    %211 = vmatpush.msra.mxu0 %v132
    %212 = vmatpush.msra.mxu0 %v128
    %213 = vmatpush.msra.mxu0 %v124
    %214 = vmatpush.msra.mxu0 %v120
    %215 = vmatpush.msra.mxu0 %v116
    %216 = vmatpush.msra.mxu0 %v112
    %217 = vmatpush.msra.mxu0 %v108
    %218 = vmatpush.msra.mxu0 %v104
    %219 = vmatpush.msra.mxu0 %v100
    %220 = vmatpush.msra.mxu0 %v96
    %221 = vmatpush.msra.mxu0 %v92
    %222 = vmatmul.f32.gmra.mxu0 %v83
    %v223 = vpop.f32.mrf.mxu0
    %v224 = vadd.f32 %v158, %v223
    %225 = vmatmul.f32.gmra.mxu0 %v84
    %v226 = vpop.f32.mrf.mxu0
    %v227 = vadd.f32 %v158, %v226
    %228 = vmatmul.f32.gmra.mxu0 %v85
    %v229 = vpop.f32.mrf.mxu0
    %v230 = vadd.f32 %v158, %v229
    %231 = vmatmul.f32.gmra.mxu0 %v86
    %v232 = vpop.f32.mrf.mxu0
    %v233 = vadd.f32 %v158, %v232
    %234 = vmatmul.f32.gmra.mxu0 %v87
    %v235 = vpop.f32.mrf.mxu0
    %v236 = vadd.f32 %v158, %v235
    %237 = vmatmul.f32.gmra.mxu0 %v88
    %v238 = vpop.f32.mrf.mxu0
    %v239 = vadd.f32 %v158, %v238
    %240 = vmatmul.f32.gmra.mxu0 %v89
    %v241 = vpop.f32.mrf.mxu0
    %v242 = vadd.f32 %v158, %v241
    %243 = vmatmul.f32.gmra.mxu0 %v90
    %v244 = vpop.f32.mrf.mxu0
    %v245 = vadd.f32 %v158, %v244
    %246 = vdwg.mxu0
    %247 = vmatpush.msra.mxu0 %v153
    %248 = vmatpush.msra.mxu0 %v149
    %249 = vmatpush.msra.mxu0 %v145
    %250 = vmatpush.msra.mxu0 %v141
    %251 = vmatpush.msra.mxu0 %v137
    %252 = vmatpush.msra.mxu0 %v133
    %253 = vmatpush.msra.mxu0 %v129
    %254 = vmatpush.msra.mxu0 %v125
    %255 = vmatpush.msra.mxu0 %v121
    %256 = vmatpush.msra.mxu0 %v117
    %257 = vmatpush.msra.mxu0 %v113
    %258 = vmatpush.msra.mxu0 %v109
    %259 = vmatpush.msra.mxu0 %v105
    %260 = vmatpush.msra.mxu0 %v101
    %261 = vmatpush.msra.mxu0 %v97
    %262 = vmatpush.msra.mxu0 %v93
    %263 = vmatmul.f32.gmra.mxu0 %v83
    %v264 = vpop.f32.mrf.mxu0
    %v265 = vadd.f32 %v159, %v264
    %266 = vmatmul.f32.gmra.mxu0 %v84
    %v267 = vpop.f32.mrf.mxu0
    %v268 = vadd.f32 %v159, %v267
    %269 = vmatmul.f32.gmra.mxu0 %v85
    %v270 = vpop.f32.mrf.mxu0
    %v271 = vadd.f32 %v159, %v270
    %272 = vmatmul.f32.gmra.mxu0 %v86
    %v273 = vpop.f32.mrf.mxu0
    %v274 = vadd.f32 %v159, %v273
    %275 = vmatmul.f32.gmra.mxu0 %v87
    %v276 = vpop.f32.mrf.mxu0
    %v277 = vadd.f32 %v159, %v276
    %278 = vmatmul.f32.gmra.mxu0 %v88
    %v279 = vpop.f32.mrf.mxu0
    %v280 = vadd.f32 %v159, %v279
    %281 = vmatmul.f32.gmra.mxu0 %v89
    %v282 = vpop.f32.mrf.mxu0
    %v283 = vadd.f32 %v159, %v282
    %284 = vmatmul.f32.gmra.mxu0 %v90
    %v285 = vpop.f32.mrf.mxu0
    %v286 = vadd.f32 %v159, %v285
    %287 = vdwg.mxu0
    %288 = vmatpush.msra.mxu0 %v154
    %289 = vmatpush.msra.mxu0 %v150
    %290 = vmatpush.msra.mxu0 %v146
    %291 = vmatpush.msra.mxu0 %v142
    %292 = vmatpush.msra.mxu0 %v138
    %293 = vmatpush.msra.mxu0 %v134
    %294 = vmatpush.msra.mxu0 %v130
    %295 = vmatpush.msra.mxu0 %v126
    %296 = vmatpush.msra.mxu0 %v122
    %297 = vmatpush.msra.mxu0 %v118
    %298 = vmatpush.msra.mxu0 %v114
    %299 = vmatpush.msra.mxu0 %v110
    %300 = vmatpush.msra.mxu0 %v106
    %301 = vmatpush.msra.mxu0 %v102
    %302 = vmatpush.msra.mxu0 %v98
    %303 = vmatpush.msra.mxu0 %v94
    %304 = vmatmul.f32.gmra.mxu0 %v83
    %v305 = vpop.f32.mrf.mxu0
    %v306 = vadd.f32 %v160, %v305
    %307 = vmatmul.f32.gmra.mxu0 %v84
    %v308 = vpop.f32.mrf.mxu0
    %v309 = vadd.f32 %v160, %v308
    %310 = vmatmul.f32.gmra.mxu0 %v85
    %v311 = vpop.f32.mrf.mxu0
    %v312 = vadd.f32 %v160, %v311
    %313 = vmatmul.f32.gmra.mxu0 %v86
    %v314 = vpop.f32.mrf.mxu0
    %v315 = vadd.f32 %v160, %v314
    %316 = vmatmul.f32.gmra.mxu0 %v87
    %v317 = vpop.f32.mrf.mxu0
    %v318 = vadd.f32 %v160, %v317
    %319 = vmatmul.f32.gmra.mxu0 %v88
    %v320 = vpop.f32.mrf.mxu0
    %v321 = vadd.f32 %v160, %v320
    %322 = vmatmul.f32.gmra.mxu0 %v89
    %v323 = vpop.f32.mrf.mxu0
    %v324 = vadd.f32 %v160, %v323
    %325 = vmatmul.f32.gmra.mxu0 %v90
    %v326 = vpop.f32.mrf.mxu0
    %v327 = vadd.f32 %v160, %v326
    %328 = vdwg.mxu0
    %329 = vst [vmem:[#allocation2] sm:$0xff] %v183
    %330 = vst [vmem:[#allocation2 + $0x8] sm:$0xff] %v224
    %331 = vst [vmem:[#allocation2 + $0x10] sm:$0xff] %v265
    %332 = vst [vmem:[#allocation2 + $0x18] sm:$0xff] %v306
    %333 = vst [vmem:[#allocation2 + $0x20] sm:$0xff] %v186
    %334 = vst [vmem:[#allocation2 + $0x28] sm:$0xff] %v227
    %335 = vst [vmem:[#allocation2 + $0x30] sm:$0xff] %v268
    %336 = vst [vmem:[#allocation2 + $0x38] sm:$0xff] %v309
    %337 = vst [vmem:[#allocation2 + $0x40] sm:$0xff] %v189
    %338 = vst [vmem:[#allocation2 + $0x48] sm:$0xff] %v230
    %339 = vst [vmem:[#allocation2 + $0x50] sm:$0xff] %v271
    %340 = vst [vmem:[#allocation2 + $0x58] sm:$0xff] %v312
    %341 = vst [vmem:[#allocation2 + $0x60] sm:$0xff] %v192
    %342 = vst [vmem:[#allocation2 + $0x68] sm:$0xff] %v233
    %343 = vst [vmem:[#allocation2 + $0x70] sm:$0xff] %v274
    %344 = vst [vmem:[#allocation2 + $0x78] sm:$0xff] %v315
    %345 = vst [vmem:[#allocation2 + $0x80] sm:$0xff] %v195
    %346 = vst [vmem:[#allocation2 + $0x88] sm:$0xff] %v236
    %347 = vst [vmem:[#allocation2 + $0x90] sm:$0xff] %v277
    %348 = vst [vmem:[#allocation2 + $0x98] sm:$0xff] %v318
    %349 = vst [vmem:[#allocation2 + $0xa0] sm:$0xff] %v198
    %350 = vst [vmem:[#allocation2 + $0xa8] sm:$0xff] %v239
    %351 = vst [vmem:[#allocation2 + $0xb0] sm:$0xff] %v280
    %352 = vst [vmem:[#allocation2 + $0xb8] sm:$0xff] %v321
    %353 = vst [vmem:[#allocation2 + $0xc0] sm:$0xff] %v201
    %354 = vst [vmem:[#allocation2 + $0xc8] sm:$0xff] %v242
    %355 = vst [vmem:[#allocation2 + $0xd0] sm:$0xff] %v283
    %356 = vst [vmem:[#allocation2 + $0xd8] sm:$0xff] %v324
    %357 = vst [vmem:[#allocation2 + $0xe0] sm:$0xff] %v204
    %358 = vst [vmem:[#allocation2 + $0xe8] sm:$0xff] %v245
    %359 = vst [vmem:[#allocation2 + $0xf0] sm:$0xff] %v286
    %360 = vst [vmem:[#allocation2 + $0xf8] sm:$0xff] %v327
    %v361 = vld [vmem:[#allocation2] sm:$0xff]
    %v362 = vld [vmem:[#allocation2 + $0x8] sm:$0xff]
    %v363 = vld [vmem:[#allocation2 + $0x10] sm:$0xff]
    %v364 = vld [vmem:[#allocation2 + $0x18] sm:$0xff]
    %v365 = vld [vmem:[#allocation8] sm:$0xff]
    %v366 = vld [vmem:[#allocation8 + $0x8] sm:$0xff]
    %v367 = vld [vmem:[#allocation8 + $0x10] sm:$0xff]
    %v368 = vld [vmem:[#allocation8 + $0x18] sm:$0xff]
    %v369 = vld [vmem:[#allocation8 + $0x20] sm:$0xff]
    %v370 = vld [vmem:[#allocation8 + $0x28] sm:$0xff]
    %v371 = vld [vmem:[#allocation8 + $0x30] sm:$0xff]
    %v372 = vld [vmem:[#allocation8 + $0x38] sm:$0xff]
    %v373 = vld [vmem:[#allocation8 + $0x40] sm:$0xff]
    %v374 = vld [vmem:[#allocation8 + $0x48] sm:$0xff]
    %v375 = vld [vmem:[#allocation8 + $0x50] sm:$0xff]
    %v376 = vld [vmem:[#allocation8 + $0x58] sm:$0xff]
    %v377 = vld [vmem:[#allocation8 + $0x60] sm:$0xff]
    %v378 = vld [vmem:[#allocation8 + $0x68] sm:$0xff]
    %v379 = vld [vmem:[#allocation8 + $0x70] sm:$0xff]
    %v380 = vld [vmem:[#allocation8 + $0x78] sm:$0xff]
    %v381 = vld [vmem:[#allocation8 + $0x80] sm:$0xff]
    %v382 = vld [vmem:[#allocation8 + $0x88] sm:$0xff]
    %v383 = vld [vmem:[#allocation8 + $0x90] sm:$0xff]
    %v384 = vld [vmem:[#allocation8 + $0x98] sm:$0xff]
    %v385 = vld [vmem:[#allocation8 + $0xa0] sm:$0xff]
    %v386 = vld [vmem:[#allocation8 + $0xa8] sm:$0xff]
    %v387 = vld [vmem:[#allocation8 + $0xb0] sm:$0xff]
    %v388 = vld [vmem:[#allocation8 + $0xb8] sm:$0xff]
    %v389 = vld [vmem:[#allocation8 + $0xc0] sm:$0xff]
    %v390 = vld [vmem:[#allocation8 + $0xc8] sm:$0xff]
    %v391 = vld [vmem:[#allocation8 + $0xd0] sm:$0xff]
    %v392 = vld [vmem:[#allocation8 + $0xd8] sm:$0xff]
    %v393 = vld [vmem:[#allocation8 + $0xe0] sm:$0xff]
    %v394 = vld [vmem:[#allocation8 + $0xe8] sm:$0xff]
    %v395 = vld [vmem:[#allocation8 + $0xf0] sm:$0xff]
    %v396 = vld [vmem:[#allocation8 + $0xf8] sm:$0xff]
    %v397 = vld [vmem:[#allocation8 + $0x100] sm:$0xff]
    %v398 = vld [vmem:[#allocation8 + $0x108] sm:$0xff]
    %v399 = vld [vmem:[#allocation8 + $0x110] sm:$0xff]
    %v400 = vld [vmem:[#allocation8 + $0x118] sm:$0xff]
    %v401 = vld [vmem:[#allocation8 + $0x120] sm:$0xff]
    %v402 = vld [vmem:[#allocation8 + $0x128] sm:$0xff]
    %v403 = vld [vmem:[#allocation8 + $0x130] sm:$0xff]
    %v404 = vld [vmem:[#allocation8 + $0x138] sm:$0xff]
    %v405 = vld [vmem:[#allocation8 + $0x140] sm:$0xff]
    %v406 = vld [vmem:[#allocation8 + $0x148] sm:$0xff]
    %v407 = vld [vmem:[#allocation8 + $0x150] sm:$0xff]
    %v408 = vld [vmem:[#allocation8 + $0x158] sm:$0xff]
    %v409 = vld [vmem:[#allocation8 + $0x160] sm:$0xff]
    %v410 = vld [vmem:[#allocation8 + $0x168] sm:$0xff]
    %v411 = vld [vmem:[#allocation8 + $0x170] sm:$0xff]
    %v412 = vld [vmem:[#allocation8 + $0x178] sm:$0xff]
    %v413 = vld [vmem:[#allocation8 + $0x180] sm:$0xff]
    %v414 = vld [vmem:[#allocation8 + $0x188] sm:$0xff]
    %v415 = vld [vmem:[#allocation8 + $0x190] sm:$0xff]
    %v416 = vld [vmem:[#allocation8 + $0x198] sm:$0xff]
    %v417 = vld [vmem:[#allocation8 + $0x1a0] sm:$0xff]
    %v418 = vld [vmem:[#allocation8 + $0x1a8] sm:$0xff]
    %v419 = vld [vmem:[#allocation8 + $0x1b0] sm:$0xff]
    %v420 = vld [vmem:[#allocation8 + $0x1b8] sm:$0xff]
    %v421 = vld [vmem:[#allocation8 + $0x1c0] sm:$0xff]
    %v422 = vld [vmem:[#allocation8 + $0x1c8] sm:$0xff]
    %v423 = vld [vmem:[#allocation8 + $0x1d0] sm:$0xff]
    %v424 = vld [vmem:[#allocation8 + $0x1d8] sm:$0xff]
    %v425 = vld [vmem:[#allocation8 + $0x1e0] sm:$0xff]
    %v426 = vld [vmem:[#allocation8 + $0x1e8] sm:$0xff]
    %v427 = vld [vmem:[#allocation8 + $0x1f0] sm:$0xff]
    %v428 = vld [vmem:[#allocation8 + $0x1f8] sm:$0xff]
    %429 = vmatpush.msra.mxu0 %v425
    %430 = vmatpush.msra.mxu0 %v421
    %431 = vmatpush.msra.mxu0 %v417
    %432 = vmatpush.msra.mxu0 %v413
    %433 = vmatpush.msra.mxu0 %v409
    %434 = vmatpush.msra.mxu0 %v405
    %435 = vmatpush.msra.mxu0 %v401
    %436 = vmatpush.msra.mxu0 %v397
    %437 = vmatpush.msra.mxu0 %v393
    %438 = vmatpush.msra.mxu0 %v389
    %439 = vmatpush.msra.mxu0 %v385
    %440 = vmatpush.msra.mxu0 %v381
    %441 = vmatpush.msra.mxu0 %v377
    %442 = vmatpush.msra.mxu0 %v373
    %443 = vmatpush.msra.mxu0 %v369
    %444 = vmatpush.msra.mxu0 %v365
    %445 = vmatmul.f32.gmra.mxu0 0.0
    %v446 = vpop.f32.mrf.mxu0
    %v447 = vadd.f32 0.0, %v446
    %448 = vdwg.mxu0
    %449 = vmatpush.msra.mxu0 %v426
    %450 = vmatpush.msra.mxu0 %v422
    %451 = vmatpush.msra.mxu0 %v418
    %452 = vmatpush.msra.mxu0 %v414
    %453 = vmatpush.msra.mxu0 %v410
    %454 = vmatpush.msra.mxu0 %v406
    %455 = vmatpush.msra.mxu0 %v402
    %456 = vmatpush.msra.mxu0 %v398
    %457 = vmatpush.msra.mxu0 %v394
    %458 = vmatpush.msra.mxu0 %v390
    %459 = vmatpush.msra.mxu0 %v386
    %460 = vmatpush.msra.mxu0 %v382
    %461 = vmatpush.msra.mxu0 %v378
    %462 = vmatpush.msra.mxu0 %v374
    %463 = vmatpush.msra.mxu0 %v370
    %464 = vmatpush.msra.mxu0 %v366
    %465 = vmatmul.f32.gmra.mxu0 0.0
    %v466 = vpop.f32.mrf.mxu0
    %v467 = vadd.f32 0.0, %v466
    %468 = vdwg.mxu0
    %469 = vmatpush.msra.mxu0 %v427
    %470 = vmatpush.msra.mxu0 %v423
    %471 = vmatpush.msra.mxu0 %v419
    %472 = vmatpush.msra.mxu0 %v415
    %473 = vmatpush.msra.mxu0 %v411
    %474 = vmatpush.msra.mxu0 %v407
    %475 = vmatpush.msra.mxu0 %v403
    %476 = vmatpush.msra.mxu0 %v399
    %477 = vmatpush.msra.mxu0 %v395
    %478 = vmatpush.msra.mxu0 %v391
    %479 = vmatpush.msra.mxu0 %v387
    %480 = vmatpush.msra.mxu0 %v383
    %481 = vmatpush.msra.mxu0 %v379
    %482 = vmatpush.msra.mxu0 %v375
    %483 = vmatpush.msra.mxu0 %v371
    %484 = vmatpush.msra.mxu0 %v367
    %485 = vmatmul.f32.gmra.mxu0 0.0
    %v486 = vpop.f32.mrf.mxu0
    %v487 = vadd.f32 0.0, %v486
    %488 = vdwg.mxu0
    %489 = vmatpush.msra.mxu0 %v428
    %490 = vmatpush.msra.mxu0 %v424
    %491 = vmatpush.msra.mxu0 %v420
    %492 = vmatpush.msra.mxu0 %v416
    %493 = vmatpush.msra.mxu0 %v412
    %494 = vmatpush.msra.mxu0 %v408
    %495 = vmatpush.msra.mxu0 %v404
    %496 = vmatpush.msra.mxu0 %v400
    %497 = vmatpush.msra.mxu0 %v396
    %498 = vmatpush.msra.mxu0 %v392
    %499 = vmatpush.msra.mxu0 %v388
    %500 = vmatpush.msra.mxu0 %v384
    %501 = vmatpush.msra.mxu0 %v380
    %502 = vmatpush.msra.mxu0 %v376
    %503 = vmatpush.msra.mxu0 %v372
    %504 = vmatpush.msra.mxu0 %v368
    %505 = vmatmul.f32.gmra.mxu0 0.0
    %v506 = vpop.f32.mrf.mxu0
    %v507 = vadd.f32 0.0, %v506
    %508 = vdwg.mxu0
    %v509 = vadd.f32 %v361, %v447
    %v510 = vadd.f32 %v362, %v467
    %v511 = vadd.f32 %v363, %v487
    %v512 = vadd.f32 %v364, %v507
    %v513 = vxor.u32 %v509, 2147483648
    %v514 = vmul.f32 %v513, 1.442695
    %v515 = vpow.pop %v514
    %v516 = vadd.f32 %v515, 1.0
    %v517 = vrcp.pop %v516
    %v518 = vmul.f32 %v516, %v517
    %v519 = vsub.f32 1.0, %v518
    %v520 = vmul.f32 %v517, %v519
    %v521 = vadd.f32 %v517, %v520
    %vm522 = vweird.f32 %v516
    %vm523 = vweird.f32 %v517
    %vm524 = vmor %vm522, %vm523
    %v525 = vsel %vm524, %v517, %v521
    %v526 = vand.u32 2147483647, %v516
    %vm527 = vcmp.eq.f32.partialorder %v526, 8.507059e+37
    %v528 = vand.u32 %v516, 2147483648
    %v529 = vor.u32 1.1754944e-38, %v528
    %v530 = vsel %vm527, %v529, %v525
    %v531 = vmul.f32 1.0, %v530
    %v532 = vxor.u32 %v510, 2147483648
    %v533 = vmul.f32 %v532, 1.442695
    %v534 = vpow.pop %v533
    %v535 = vadd.f32 %v534, 1.0
    %v536 = vrcp.pop %v535
    %v537 = vmul.f32 %v535, %v536
    %v538 = vsub.f32 1.0, %v537
    %v539 = vmul.f32 %v536, %v538
    %v540 = vadd.f32 %v536, %v539
    %vm541 = vweird.f32 %v535
    %vm542 = vweird.f32 %v536
    %vm543 = vmor %vm541, %vm542
    %v544 = vsel %vm543, %v536, %v540
    %v545 = vand.u32 2147483647, %v535
    %vm546 = vcmp.eq.f32.partialorder %v545, 8.507059e+37
    %v547 = vand.u32 %v535, 2147483648
    %v548 = vor.u32 1.1754944e-38, %v547
    %v549 = vsel %vm546, %v548, %v544
    %v550 = vmul.f32 1.0, %v549
    %v551 = vtanh.pop %v511
    %v552 = vxor.u32 %v512, 2147483648
    %v553 = vmul.f32 %v552, 1.442695
    %v554 = vpow.pop %v553
    %v555 = vadd.f32 %v554, 1.0
    %v556 = vrcp.pop %v555
    %v557 = vmul.f32 %v555, %v556
    %v558 = vsub.f32 1.0, %v557
    %v559 = vmul.f32 %v556, %v558
    %v560 = vadd.f32 %v556, %v559
    %vm561 = vweird.f32 %v555
    %vm562 = vweird.f32 %v556
    %vm563 = vmor %vm561, %vm562
    %v564 = vsel %vm563, %v556, %v560
    %v565 = vand.u32 2147483647, %v555
    %vm566 = vcmp.eq.f32.partialorder %v565, 8.507059e+37
    %v567 = vand.u32 %v555, 2147483648
    %v568 = vor.u32 1.1754944e-38, %v567
    %v569 = vsel %vm566, %v568, %v564
    %v570 = vmul.f32 1.0, %v569
    %v571 = vmul.f32 %v550, 0.0
    %v572 = vmul.f32 %v531, %v551
    %v573 = vadd.f32 %v571, %v572
    %v574 = vtanh.pop %v573
    %v575 = vmul.f32 %v570, %v574
    %576 = vst [vmem:[#allocation11] sm:$0xff] %v575
    %s577 = scalar_lea.vmem [#allocation2], 32
    %v578 = vld [vmem:[%s577] sm:$0xff]
    %v579 = vld [vmem:[%s577 + $0x8] sm:$0xff]
    %v580 = vld [vmem:[%s577 + $0x10] sm:$0xff]
    %v581 = vld [vmem:[%s577 + $0x18] sm:$0xff]
    %v582 = vld [vmem:[#allocation8] sm:$0xff]
    %v583 = vld [vmem:[#allocation8 + $0x8] sm:$0xff]
    %v584 = vld [vmem:[#allocation8 + $0x10] sm:$0xff]
    %v585 = vld [vmem:[#allocation8 + $0x18] sm:$0xff]
    %v586 = vld [vmem:[#allocation8 + $0x20] sm:$0xff]
    %v587 = vld [vmem:[#allocation8 + $0x28] sm:$0xff]
    %v588 = vld [vmem:[#allocation8 + $0x30] sm:$0xff]
    %v589 = vld [vmem:[#allocation8 + $0x38] sm:$0xff]
    %v590 = vld [vmem:[#allocation8 + $0x40] sm:$0xff]
    %v591 = vld [vmem:[#allocation8 + $0x48] sm:$0xff]
    %v592 = vld [vmem:[#allocation8 + $0x50] sm:$0xff]
    %v593 = vld [vmem:[#allocation8 + $0x58] sm:$0xff]
    %v594 = vld [vmem:[#allocation8 + $0x60] sm:$0xff]
    %v595 = vld [vmem:[#allocation8 + $0x68] sm:$0xff]
    %v596 = vld [vmem:[#allocation8 + $0x70] sm:$0xff]
    %v597 = vld [vmem:[#allocation8 + $0x78] sm:$0xff]
    %v598 = vld [vmem:[#allocation8 + $0x80] sm:$0xff]
    %v599 = vld [vmem:[#allocation8 + $0x88] sm:$0xff]
    %v600 = vld [vmem:[#allocation8 + $0x90] sm:$0xff]
    %v601 = vld [vmem:[#allocation8 + $0x98] sm:$0xff]
    %v602 = vld [vmem:[#allocation8 + $0xa0] sm:$0xff]
    %v603 = vld [vmem:[#allocation8 + $0xa8] sm:$0xff]
    %v604 = vld [vmem:[#allocation8 + $0xb0] sm:$0xff]
    %v605 = vld [vmem:[#allocation8 + $0xb8] sm:$0xff]
    %v606 = vld [vmem:[#allocation8 + $0xc0] sm:$0xff]
    %v607 = vld [vmem:[#allocation8 + $0xc8] sm:$0xff]
    %v608 = vld [vmem:[#allocation8 + $0xd0] sm:$0xff]
    %v609 = vld [vmem:[#allocation8 + $0xd8] sm:$0xff]
    %v610 = vld [vmem:[#allocation8 + $0xe0] sm:$0xff]
    %v611 = vld [vmem:[#allocation8 + $0xe8] sm:$0xff]
    %v612 = vld [vmem:[#allocation8 + $0xf0] sm:$0xff]
    %v613 = vld [vmem:[#allocation8 + $0xf8] sm:$0xff]
    %v614 = vld [vmem:[#allocation8 + $0x100] sm:$0xff]
    %v615 = vld [vmem:[#allocation8 + $0x108] sm:$0xff]
    %v616 = vld [vmem:[#allocation8 + $0x110] sm:$0xff]
    %v617 = vld [vmem:[#allocation8 + $0x118] sm:$0xff]
    %v618 = vld [vmem:[#allocation8 + $0x120] sm:$0xff]
    %v619 = vld [vmem:[#allocation8 + $0x128] sm:$0xff]
    %v620 = vld [vmem:[#allocation8 + $0x130] sm:$0xff]
    %v621 = vld [vmem:[#allocation8 + $0x138] sm:$0xff]
    %v622 = vld [vmem:[#allocation8 + $0x140] sm:$0xff]
    %v623 = vld [vmem:[#allocation8 + $0x148] sm:$0xff]
    %v624 = vld [vmem:[#allocation8 + $0x150] sm:$0xff]
    %v625 = vld [vmem:[#allocation8 + $0x158] sm:$0xff]
    %v626 = vld [vmem:[#allocation8 + $0x160] sm:$0xff]
    %v627 = vld [vmem:[#allocation8 + $0x168] sm:$0xff]
    %v628 = vld [vmem:[#allocation8 + $0x170] sm:$0xff]
    %v629 = vld [vmem:[#allocation8 + $0x178] sm:$0xff]
    %v630 = vld [vmem:[#allocation8 + $0x180] sm:$0xff]
    %v631 = vld [vmem:[#allocation8 + $0x188] sm:$0xff]
    %v632 = vld [vmem:[#allocation8 + $0x190] sm:$0xff]
    %v633 = vld [vmem:[#allocation8 + $0x198] sm:$0xff]
    %v634 = vld [vmem:[#allocation8 + $0x1a0] sm:$0xff]
    %v635 = vld [vmem:[#allocation8 + $0x1a8] sm:$0xff]
    %v636 = vld [vmem:[#allocation8 + $0x1b0] sm:$0xff]
    %v637 = vld [vmem:[#allocation8 + $0x1b8] sm:$0xff]
    %v638 = vld [vmem:[#allocation8 + $0x1c0] sm:$0xff]
    %v639 = vld [vmem:[#allocation8 + $0x1c8] sm:$0xff]
    %v640 = vld [vmem:[#allocation8 + $0x1d0] sm:$0xff]
    %v641 = vld [vmem:[#allocation8 + $0x1d8] sm:$0xff]
    %v642 = vld [vmem:[#allocation8 + $0x1e0] sm:$0xff]
    %v643 = vld [vmem:[#allocation8 + $0x1e8] sm:$0xff]
    %v644 = vld [vmem:[#allocation8 + $0x1f0] sm:$0xff]
    %v645 = vld [vmem:[#allocation8 + $0x1f8] sm:$0xff]
    %646 = vmatpush.msra.mxu0 %v642
    %647 = vmatpush.msra.mxu0 %v638
    %648 = vmatpush.msra.mxu0 %v634
    %649 = vmatpush.msra.mxu0 %v630
    %650 = vmatpush.msra.mxu0 %v626
    %651 = vmatpush.msra.mxu0 %v622
    %652 = vmatpush.msra.mxu0 %v618
    %653 = vmatpush.msra.mxu0 %v614
    %654 = vmatpush.msra.mxu0 %v610
    %655 = vmatpush.msra.mxu0 %v606
    %656 = vmatpush.msra.mxu0 %v602
    %657 = vmatpush.msra.mxu0 %v598
    %658 = vmatpush.msra.mxu0 %v594
    %659 = vmatpush.msra.mxu0 %v590
    %660 = vmatpush.msra.mxu0 %v586
    %661 = vmatpush.msra.mxu0 %v582
    %662 = vmatmul.f32.gmra.mxu0 %v575
    %v663 = vpop.f32.mrf.mxu0
    %v664 = vadd.f32 0.0, %v663
    %665 = vdwg.mxu0
    %666 = vmatpush.msra.mxu0 %v643
    %667 = vmatpush.msra.mxu0 %v639
    %668 = vmatpush.msra.mxu0 %v635
    %669 = vmatpush.msra.mxu0 %v631
    %670 = vmatpush.msra.mxu0 %v627
    %671 = vmatpush.msra.mxu0 %v623
    %672 = vmatpush.msra.mxu0 %v619
    %673 = vmatpush.msra.mxu0 %v615
    %674 = vmatpush.msra.mxu0 %v611
    %675 = vmatpush.msra.mxu0 %v607
    %676 = vmatpush.msra.mxu0 %v603
    %677 = vmatpush.msra.mxu0 %v599
    %678 = vmatpush.msra.mxu0 %v595
    %679 = vmatpush.msra.mxu0 %v591
    %680 = vmatpush.msra.mxu0 %v587
    %681 = vmatpush.msra.mxu0 %v583
    %682 = vmatmul.f32.gmra.mxu0 %v575
    %v683 = vpop.f32.mrf.mxu0
    %v684 = vadd.f32 0.0, %v683
    %685 = vdwg.mxu0
    %686 = vmatpush.msra.mxu0 %v644
    %687 = vmatpush.msra.mxu0 %v640
    %688 = vmatpush.msra.mxu0 %v636
    %689 = vmatpush.msra.mxu0 %v632
    %690 = vmatpush.msra.mxu0 %v628
    %691 = vmatpush.msra.mxu0 %v624
    %692 = vmatpush.msra.mxu0 %v620
    %693 = vmatpush.msra.mxu0 %v616
    %694 = vmatpush.msra.mxu0 %v612
    %695 = vmatpush.msra.mxu0 %v608
    %696 = vmatpush.msra.mxu0 %v604
    %697 = vmatpush.msra.mxu0 %v600
    %698 = vmatpush.msra.mxu0 %v596
    %699 = vmatpush.msra.mxu0 %v592
    %700 = vmatpush.msra.mxu0 %v588
    %701 = vmatpush.msra.mxu0 %v584
    %702 = vmatmul.f32.gmra.mxu0 %v575
    %v703 = vpop.f32.mrf.mxu0
    %v704 = vadd.f32 0.0, %v703
    %705 = vdwg.mxu0
    %706 = vmatpush.msra.mxu0 %v645
    %707 = vmatpush.msra.mxu0 %v641
    %708 = vmatpush.msra.mxu0 %v637
    %709 = vmatpush.msra.mxu0 %v633
    %710 = vmatpush.msra.mxu0 %v629
    %711 = vmatpush.msra.mxu0 %v625
    %712 = vmatpush.msra.mxu0 %v621
    %713 = vmatpush.msra.mxu0 %v617
    %714 = vmatpush.msra.mxu0 %v613
    %715 = vmatpush.msra.mxu0 %v609
    %716 = vmatpush.msra.mxu0 %v605
    %717 = vmatpush.msra.mxu0 %v601
    %718 = vmatpush.msra.mxu0 %v597
    %719 = vmatpush.msra.mxu0 %v593
    %720 = vmatpush.msra.mxu0 %v589
    %721 = vmatpush.msra.mxu0 %v585
    %722 = vmatmul.f32.gmra.mxu0 %v575
    %v723 = vpop.f32.mrf.mxu0
    %v724 = vadd.f32 0.0, %v723
    %725 = vdwg.mxu0
    %v726 = vadd.f32 %v578, %v664
    %v727 = vadd.f32 %v579, %v684
    %v728 = vadd.f32 %v580, %v704
    %v729 = vadd.f32 %v581, %v724
    %v730 = vxor.u32 %v726, 2147483648
    %v731 = vmul.f32 %v730, 1.442695
    %v732 = vpow.pop %v731
    %v733 = vadd.f32 %v732, 1.0
    %v734 = vrcp.pop %v733
    %v735 = vmul.f32 %v733, %v734
    %v736 = vsub.f32 1.0, %v735
    %v737 = vmul.f32 %v734, %v736
    %v738 = vadd.f32 %v734, %v737
    %vm739 = vweird.f32 %v733
    %vm740 = vweird.f32 %v734
    %vm741 = vmor %vm739, %vm740
    %v742 = vsel %vm741, %v734, %v738
    %v743 = vand.u32 2147483647, %v733
    %vm744 = vcmp.eq.f32.partialorder %v743, 8.507059e+37
    %v745 = vand.u32 %v733, 2147483648
    %v746 = vor.u32 1.1754944e-38, %v745
    %v747 = vsel %vm744, %v746, %v742
    %v748 = vmul.f32 1.0, %v747
    %v749 = vxor.u32 %v727, 2147483648
    %v750 = vmul.f32 %v749, 1.442695
    %v751 = vpow.pop %v750
    %v752 = vadd.f32 %v751, 1.0
    %v753 = vrcp.pop %v752
    %v754 = vmul.f32 %v752, %v753
    %v755 = vsub.f32 1.0, %v754
    %v756 = vmul.f32 %v753, %v755
    %v757 = vadd.f32 %v753, %v756
    %vm758 = vweird.f32 %v752
    %vm759 = vweird.f32 %v753
    %vm760 = vmor %vm758, %vm759
    %v761 = vsel %vm760, %v753, %v757
    %v762 = vand.u32 2147483647, %v752
    %vm763 = vcmp.eq.f32.partialorder %v762, 8.507059e+37
    %v764 = vand.u32 %v752, 2147483648
    %v765 = vor.u32 1.1754944e-38, %v764
    %v766 = vsel %vm763, %v765, %v761
    %v767 = vmul.f32 1.0, %v766
    %v768 = vtanh.pop %v728
    %v769 = vxor.u32 %v729, 2147483648
    %v770 = vmul.f32 %v769, 1.442695
    %v771 = vpow.pop %v770
    %v772 = vadd.f32 %v771, 1.0
    %v773 = vrcp.pop %v772
    %v774 = vmul.f32 %v772, %v773
    %v775 = vsub.f32 1.0, %v774
    %v776 = vmul.f32 %v773, %v775
    %v777 = vadd.f32 %v773, %v776
    %vm778 = vweird.f32 %v772
    %vm779 = vweird.f32 %v773
    %vm780 = vmor %vm778, %vm779
    %v781 = vsel %vm780, %v773, %v777
    %v782 = vand.u32 2147483647, %v772
    %vm783 = vcmp.eq.f32.partialorder %v782, 8.507059e+37
    %v784 = vand.u32 %v772, 2147483648
    %v785 = vor.u32 1.1754944e-38, %v784
    %v786 = vsel %vm783, %v785, %v781
    %v787 = vmul.f32 1.0, %v786
    %v788 = vmul.f32 %v767, %v573
    %v789 = vmul.f32 %v748, %v768
    %v790 = vadd.f32 %v788, %v789
    %v791 = vtanh.pop %v790
    %v792 = vmul.f32 %v787, %v791
    %s793 = scalar_lea.vmem [#allocation11], 8
    %794 = vst [vmem:[%s793] sm:$0xff] %v792
    %s795 = scalar_lea.vmem [#allocation2], 64
    %v796 = vld [vmem:[%s795] sm:$0xff]
    %v797 = vld [vmem:[%s795 + $0x8] sm:$0xff]
    %v798 = vld [vmem:[%s795 + $0x10] sm:$0xff]
    %v799 = vld [vmem:[%s795 + $0x18] sm:$0xff]
    %v800 = vld [vmem:[#allocation8] sm:$0xff]
    %v801 = vld [vmem:[#allocation8 + $0x8] sm:$0xff]
    %v802 = vld [vmem:[#allocation8 + $0x10] sm:$0xff]
    %v803 = vld [vmem:[#allocation8 + $0x18] sm:$0xff]
    %v804 = vld [vmem:[#allocation8 + $0x20] sm:$0xff]
    %v805 = vld [vmem:[#allocation8 + $0x28] sm:$0xff]
    %v806 = vld [vmem:[#allocation8 + $0x30] sm:$0xff]
    %v807 = vld [vmem:[#allocation8 + $0x38] sm:$0xff]
    %v808 = vld [vmem:[#allocation8 + $0x40] sm:$0xff]
    %v809 = vld [vmem:[#allocation8 + $0x48] sm:$0xff]
    %v810 = vld [vmem:[#allocation8 + $0x50] sm:$0xff]
    %v811 = vld [vmem:[#allocation8 + $0x58] sm:$0xff]
    %v812 = vld [vmem:[#allocation8 + $0x60] sm:$0xff]
    %v813 = vld [vmem:[#allocation8 + $0x68] sm:$0xff]
    %v814 = vld [vmem:[#allocation8 + $0x70] sm:$0xff]
    %v815 = vld [vmem:[#allocation8 + $0x78] sm:$0xff]
    %v816 = vld [vmem:[#allocation8 + $0x80] sm:$0xff]
    %v817 = vld [vmem:[#allocation8 + $0x88] sm:$0xff]
    %v818 = vld [vmem:[#allocation8 + $0x90] sm:$0xff]
    %v819 = vld [vmem:[#allocation8 + $0x98] sm:$0xff]
    %v820 = vld [vmem:[#allocation8 + $0xa0] sm:$0xff]
    %v821 = vld [vmem:[#allocation8 + $0xa8] sm:$0xff]
    %v822 = vld [vmem:[#allocation8 + $0xb0] sm:$0xff]
    %v823 = vld [vmem:[#allocation8 + $0xb8] sm:$0xff]
    %v824 = vld [vmem:[#allocation8 + $0xc0] sm:$0xff]
    %v825 = vld [vmem:[#allocation8 + $0xc8] sm:$0xff]
    %v826 = vld [vmem:[#allocation8 + $0xd0] sm:$0xff]
    %v827 = vld [vmem:[#allocation8 + $0xd8] sm:$0xff]
    %v828 = vld [vmem:[#allocation8 + $0xe0] sm:$0xff]
    %v829 = vld [vmem:[#allocation8 + $0xe8] sm:$0xff]
    %v830 = vld [vmem:[#allocation8 + $0xf0] sm:$0xff]
    %v831 = vld [vmem:[#allocation8 + $0xf8] sm:$0xff]
    %v832 = vld [vmem:[#allocation8 + $0x100] sm:$0xff]
    %v833 = vld [vmem:[#allocation8 + $0x108] sm:$0xff]
    %v834 = vld [vmem:[#allocation8 + $0x110] sm:$0xff]
    %v835 = vld [vmem:[#allocation8 + $0x118] sm:$0xff]
    %v836 = vld [vmem:[#allocation8 + $0x120] sm:$0xff]
    %v837 = vld [vmem:[#allocation8 + $0x128] sm:$0xff]
    %v838 = vld [vmem:[#allocation8 + $0x130] sm:$0xff]
    %v839 = vld [vmem:[#allocation8 + $0x138] sm:$0xff]
    %v840 = vld [vmem:[#allocation8 + $0x140] sm:$0xff]
    %v841 = vld [vmem:[#allocation8 + $0x148] sm:$0xff]
    %v842 = vld [vmem:[#allocation8 + $0x150] sm:$0xff]
    %v843 = vld [vmem:[#allocation8 + $0x158] sm:$0xff]
    %v844 = vld [vmem:[#allocation8 + $0x160] sm:$0xff]
    %v845 = vld [vmem:[#allocation8 + $0x168] sm:$0xff]
    %v846 = vld [vmem:[#allocation8 + $0x170] sm:$0xff]
    %v847 = vld [vmem:[#allocation8 + $0x178] sm:$0xff]
    %v848 = vld [vmem:[#allocation8 + $0x180] sm:$0xff]
    %v849 = vld [vmem:[#allocation8 + $0x188] sm:$0xff]
    %v850 = vld [vmem:[#allocation8 + $0x190] sm:$0xff]
    %v851 = vld [vmem:[#allocation8 + $0x198] sm:$0xff]
    %v852 = vld [vmem:[#allocation8 + $0x1a0] sm:$0xff]
    %v853 = vld [vmem:[#allocation8 + $0x1a8] sm:$0xff]
    %v854 = vld [vmem:[#allocation8 + $0x1b0] sm:$0xff]
    %v855 = vld [vmem:[#allocation8 + $0x1b8] sm:$0xff]
    %v856 = vld [vmem:[#allocation8 + $0x1c0] sm:$0xff]
    %v857 = vld [vmem:[#allocation8 + $0x1c8] sm:$0xff]
    %v858 = vld [vmem:[#allocation8 + $0x1d0] sm:$0xff]
    %v859 = vld [vmem:[#allocation8 + $0x1d8] sm:$0xff]
    %v860 = vld [vmem:[#allocation8 + $0x1e0] sm:$0xff]
    %v861 = vld [vmem:[#allocation8 + $0x1e8] sm:$0xff]
    %v862 = vld [vmem:[#allocation8 + $0x1f0] sm:$0xff]
    %v863 = vld [vmem:[#allocation8 + $0x1f8] sm:$0xff]
    %864 = vmatpush.msra.mxu0 %v860
    %865 = vmatpush.msra.mxu0 %v856
    %866 = vmatpush.msra.mxu0 %v852
    %867 = vmatpush.msra.mxu0 %v848
    %868 = vmatpush.msra.mxu0 %v844
    %869 = vmatpush.msra.mxu0 %v840
    %870 = vmatpush.msra.mxu0 %v836
    %871 = vmatpush.msra.mxu0 %v832
    %872 = vmatpush.msra.mxu0 %v828
    %873 = vmatpush.msra.mxu0 %v824
    %874 = vmatpush.msra.mxu0 %v820
    %875 = vmatpush.msra.mxu0 %v816
    %876 = vmatpush.msra.mxu0 %v812
    %877 = vmatpush.msra.mxu0 %v808
    %878 = vmatpush.msra.mxu0 %v804
    %879 = vmatpush.msra.mxu0 %v800
    %880 = vmatmul.f32.gmra.mxu0 %v792
    %v881 = vpop.f32.mrf.mxu0
    %v882 = vadd.f32 0.0, %v881
    %883 = vdwg.mxu0
    %884 = vmatpush.msra.mxu0 %v861
    %885 = vmatpush.msra.mxu0 %v857
    %886 = vmatpush.msra.mxu0 %v853
    %887 = vmatpush.msra.mxu0 %v849
    %888 = vmatpush.msra.mxu0 %v845
    %889 = vmatpush.msra.mxu0 %v841
    %890 = vmatpush.msra.mxu0 %v837
    %891 = vmatpush.msra.mxu0 %v833
    %892 = vmatpush.msra.mxu0 %v829
    %893 = vmatpush.msra.mxu0 %v825
    %894 = vmatpush.msra.mxu0 %v821
    %895 = vmatpush.msra.mxu0 %v817
    %896 = vmatpush.msra.mxu0 %v813
    %897 = vmatpush.msra.mxu0 %v809
    %898 = vmatpush.msra.mxu0 %v805
    %899 = vmatpush.msra.mxu0 %v801
    %900 = vmatmul.f32.gmra.mxu0 %v792
    %v901 = vpop.f32.mrf.mxu0
    %v902 = vadd.f32 0.0, %v901
    %903 = vdwg.mxu0
    %904 = vmatpush.msra.mxu0 %v862
    %905 = vmatpush.msra.mxu0 %v858
    %906 = vmatpush.msra.mxu0 %v854
    %907 = vmatpush.msra.mxu0 %v850
    %908 = vmatpush.msra.mxu0 %v846
    %909 = vmatpush.msra.mxu0 %v842
    %910 = vmatpush.msra.mxu0 %v838
    %911 = vmatpush.msra.mxu0 %v834
    %912 = vmatpush.msra.mxu0 %v830
    %913 = vmatpush.msra.mxu0 %v826
    %914 = vmatpush.msra.mxu0 %v822
    %915 = vmatpush.msra.mxu0 %v818
    %916 = vmatpush.msra.mxu0 %v814
    %917 = vmatpush.msra.mxu0 %v810
    %918 = vmatpush.msra.mxu0 %v806
    %919 = vmatpush.msra.mxu0 %v802
    %920 = vmatmul.f32.gmra.mxu0 %v792
    %v921 = vpop.f32.mrf.mxu0
    %v922 = vadd.f32 0.0, %v921
    %923 = vdwg.mxu0
    %924 = vmatpush.msra.mxu0 %v863
    %925 = vmatpush.msra.mxu0 %v859
    %926 = vmatpush.msra.mxu0 %v855
    %927 = vmatpush.msra.mxu0 %v851
    %928 = vmatpush.msra.mxu0 %v847
    %929 = vmatpush.msra.mxu0 %v843
    %930 = vmatpush.msra.mxu0 %v839
    %931 = vmatpush.msra.mxu0 %v835
    %932 = vmatpush.msra.mxu0 %v831
    %933 = vmatpush.msra.mxu0 %v827
    %934 = vmatpush.msra.mxu0 %v823
    %935 = vmatpush.msra.mxu0 %v819
    %936 = vmatpush.msra.mxu0 %v815
    %937 = vmatpush.msra.mxu0 %v811
    %938 = vmatpush.msra.mxu0 %v807
    %939 = vmatpush.msra.mxu0 %v803
    %940 = vmatmul.f32.gmra.mxu0 %v792
    %v941 = vpop.f32.mrf.mxu0
    %v942 = vadd.f32 0.0, %v941
    %943 = vdwg.mxu0
    %v944 = vadd.f32 %v796, %v882
    %v945 = vadd.f32 %v797, %v902
    %v946 = vadd.f32 %v798, %v922
    %v947 = vadd.f32 %v799, %v942
    %v948 = vxor.u32 %v944, 2147483648
    %v949 = vmul.f32 %v948, 1.442695
    %v950 = vpow.pop %v949
    %v951 = vadd.f32 %v950, 1.0
    %v952 = vrcp.pop %v951
    %v953 = vmul.f32 %v951, %v952
    %v954 = vsub.f32 1.0, %v953
    %v955 = vmul.f32 %v952, %v954
    %v956 = vadd.f32 %v952, %v955
    %vm957 = vweird.f32 %v951
    %vm958 = vweird.f32 %v952
    %vm959 = vmor %vm957, %vm958
    %v960 = vsel %vm959, %v952, %v956
    %v961 = vand.u32 2147483647, %v951
    %vm962 = vcmp.eq.f32.partialorder %v961, 8.507059e+37
    %v963 = vand.u32 %v951, 2147483648
    %v964 = vor.u32 1.1754944e-38, %v963
    %v965 = vsel %vm962, %v964, %v960
    %v966 = vmul.f32 1.0, %v965
    %v967 = vxor.u32 %v945, 2147483648
    %v968 = vmul.f32 %v967, 1.442695
    %v969 = vpow.pop %v968
    %v970 = vadd.f32 %v969, 1.0
    %v971 = vrcp.pop %v970
    %v972 = vmul.f32 %v970, %v971
    %v973 = vsub.f32 1.0, %v972
    %v974 = vmul.f32 %v971, %v973
    %v975 = vadd.f32 %v971, %v974
    %vm976 = vweird.f32 %v970
    %vm977 = vweird.f32 %v971
    %vm978 = vmor %vm976, %vm977
    %v979 = vsel %vm978, %v971, %v975
    %v980 = vand.u32 2147483647, %v970
    %vm981 = vcmp.eq.f32.partialorder %v980, 8.507059e+37
    %v982 = vand.u32 %v970, 2147483648
    %v983 = vor.u32 1.1754944e-38, %v982
    %v984 = vsel %vm981, %v983, %v979
    %v985 = vmul.f32 1.0, %v984
    %v986 = vtanh.pop %v946
    %v987 = vxor.u32 %v947, 2147483648
    %v988 = vmul.f32 %v987, 1.442695
    %v989 = vpow.pop %v988
    %v990 = vadd.f32 %v989, 1.0
    %v991 = vrcp.pop %v990
    %v992 = vmul.f32 %v990, %v991
    %v993 = vsub.f32 1.0, %v992
    %v994 = vmul.f32 %v991, %v993
    %v995 = vadd.f32 %v991, %v994
    %vm996 = vweird.f32 %v990
    %vm997 = vweird.f32 %v991
    %vm998 = vmor %vm996, %vm997
    %v999 = vsel %vm998, %v991, %v995
    %v1000 = vand.u32 2147483647, %v990
    %vm1001 = vcmp.eq.f32.partialorder %v1000, 8.507059e+37
    %v1002 = vand.u32 %v990, 2147483648
    %v1003 = vor.u32 1.1754944e-38, %v1002
    %v1004 = vsel %vm1001, %v1003, %v999
    %v1005 = vmul.f32 1.0, %v1004
    %v1006 = vmul.f32 %v985, %v790
    %v1007 = vmul.f32 %v966, %v986
    %v1008 = vadd.f32 %v1006, %v1007
    %v1009 = vtanh.pop %v1008
    %v1010 = vmul.f32 %v1005, %v1009
    %s1011 = scalar_lea.vmem [#allocation11], 16
    %1012 = vst [vmem:[%s1011] sm:$0xff] %v1010
    %s1013 = scalar_lea.vmem [#allocation2], 96
    %v1014 = vld [vmem:[%s1013] sm:$0xff]
    %v1015 = vld [vmem:[%s1013 + $0x8] sm:$0xff]
    %v1016 = vld [vmem:[%s1013 + $0x10] sm:$0xff]
    %v1017 = vld [vmem:[%s1013 + $0x18] sm:$0xff]
    %v1018 = vld [vmem:[#allocation8] sm:$0xff]
    %v1019 = vld [vmem:[#allocation8 + $0x8] sm:$0xff]
    %v1020 = vld [vmem:[#allocation8 + $0x10] sm:$0xff]
    %v1021 = vld [vmem:[#allocation8 + $0x18] sm:$0xff]
    %v1022 = vld [vmem:[#allocation8 + $0x20] sm:$0xff]
    %v1023 = vld [vmem:[#allocation8 + $0x28] sm:$0xff]
    %v1024 = vld [vmem:[#allocation8 + $0x30] sm:$0xff]
    %v1025 = vld [vmem:[#allocation8 + $0x38] sm:$0xff]
    %v1026 = vld [vmem:[#allocation8 + $0x40] sm:$0xff]
    %v1027 = vld [vmem:[#allocation8 + $0x48] sm:$0xff]
    %v1028 = vld [vmem:[#allocation8 + $0x50] sm:$0xff]
    %v1029 = vld [vmem:[#allocation8 + $0x58] sm:$0xff]
    %v1030 = vld [vmem:[#allocation8 + $0x60] sm:$0xff]
    %v1031 = vld [vmem:[#allocation8 + $0x68] sm:$0xff]
    %v1032 = vld [vmem:[#allocation8 + $0x70] sm:$0xff]
    %v1033 = vld [vmem:[#allocation8 + $0x78] sm:$0xff]
    %v1034 = vld [vmem:[#allocation8 + $0x80] sm:$0xff]
    %v1035 = vld [vmem:[#allocation8 + $0x88] sm:$0xff]
    %v1036 = vld [vmem:[#allocation8 + $0x90] sm:$0xff]
    %v1037 = vld [vmem:[#allocation8 + $0x98] sm:$0xff]
    %v1038 = vld [vmem:[#allocation8 + $0xa0] sm:$0xff]
    %v1039 = vld [vmem:[#allocation8 + $0xa8] sm:$0xff]
    %v1040 = vld [vmem:[#allocation8 + $0xb0] sm:$0xff]
    %v1041 = vld [vmem:[#allocation8 + $0xb8] sm:$0xff]
    %v1042 = vld [vmem:[#allocation8 + $0xc0] sm:$0xff]
    %v1043 = vld [vmem:[#allocation8 + $0xc8] sm:$0xff]
    %v1044 = vld [vmem:[#allocation8 + $0xd0] sm:$0xff]
    %v1045 = vld [vmem:[#allocation8 + $0xd8] sm:$0xff]
    %v1046 = vld [vmem:[#allocation8 + $0xe0] sm:$0xff]
    %v1047 = vld [vmem:[#allocation8 + $0xe8] sm:$0xff]
    %v1048 = vld [vmem:[#allocation8 + $0xf0] sm:$0xff]
    %v1049 = vld [vmem:[#allocation8 + $0xf8] sm:$0xff]
    %v1050 = vld [vmem:[#allocation8 + $0x100] sm:$0xff]
    %v1051 = vld [vmem:[#allocation8 + $0x108] sm:$0xff]
    %v1052 = vld [vmem:[#allocation8 + $0x110] sm:$0xff]
    %v1053 = vld [vmem:[#allocation8 + $0x118] sm:$0xff]
    %v1054 = vld [vmem:[#allocation8 + $0x120] sm:$0xff]
    %v1055 = vld [vmem:[#allocation8 + $0x128] sm:$0xff]
    %v1056 = vld [vmem:[#allocation8 + $0x130] sm:$0xff]
    %v1057 = vld [vmem:[#allocation8 + $0x138] sm:$0xff]
    %v1058 = vld [vmem:[#allocation8 + $0x140] sm:$0xff]
    %v1059 = vld [vmem:[#allocation8 + $0x148] sm:$0xff]
    %v1060 = vld [vmem:[#allocation8 + $0x150] sm:$0xff]
    %v1061 = vld [vmem:[#allocation8 + $0x158] sm:$0xff]
    %v1062 = vld [vmem:[#allocation8 + $0x160] sm:$0xff]
    %v1063 = vld [vmem:[#allocation8 + $0x168] sm:$0xff]
    %v1064 = vld [vmem:[#allocation8 + $0x170] sm:$0xff]
    %v1065 = vld [vmem:[#allocation8 + $0x178] sm:$0xff]
    %v1066 = vld [vmem:[#allocation8 + $0x180] sm:$0xff]
    %v1067 = vld [vmem:[#allocation8 + $0x188] sm:$0xff]
    %v1068 = vld [vmem:[#allocation8 + $0x190] sm:$0xff]
    %v1069 = vld [vmem:[#allocation8 + $0x198] sm:$0xff]
    %v1070 = vld [vmem:[#allocation8 + $0x1a0] sm:$0xff]
    %v1071 = vld [vmem:[#allocation8 + $0x1a8] sm:$0xff]
    %v1072 = vld [vmem:[#allocation8 + $0x1b0] sm:$0xff]
    %v1073 = vld [vmem:[#allocation8 + $0x1b8] sm:$0xff]
    %v1074 = vld [vmem:[#allocation8 + $0x1c0] sm:$0xff]
    %v1075 = vld [vmem:[#allocation8 + $0x1c8] sm:$0xff]
    %v1076 = vld [vmem:[#allocation8 + $0x1d0] sm:$0xff]
    %v1077 = vld [vmem:[#allocation8 + $0x1d8] sm:$0xff]
    %v1078 = vld [vmem:[#allocation8 + $0x1e0] sm:$0xff]
    %v1079 = vld [vmem:[#allocation8 + $0x1e8] sm:$0xff]
    %v1080 = vld [vmem:[#allocation8 + $0x1f0] sm:$0xff]
    %v1081 = vld [vmem:[#allocation8 + $0x1f8] sm:$0xff]
    %1082 = vmatpush.msra.mxu0 %v1078
    %1083 = vmatpush.msra.mxu0 %v1074
    %1084 = vmatpush.msra.mxu0 %v1070
    %1085 = vmatpush.msra.mxu0 %v1066
    %1086 = vmatpush.msra.mxu0 %v1062
    %1087 = vmatpush.msra.mxu0 %v1058
    %1088 = vmatpush.msra.mxu0 %v1054
    %1089 = vmatpush.msra.mxu0 %v1050
    %1090 = vmatpush.msra.mxu0 %v1046
    %1091 = vmatpush.msra.mxu0 %v1042
    %1092 = vmatpush.msra.mxu0 %v1038
    %1093 = vmatpush.msra.mxu0 %v1034
    %1094 = vmatpush.msra.mxu0 %v1030
    %1095 = vmatpush.msra.mxu0 %v1026
    %1096 = vmatpush.msra.mxu0 %v1022
    %1097 = vmatpush.msra.mxu0 %v1018
    %1098 = vmatmul.f32.gmra.mxu0 %v1010
    %v1099 = vpop.f32.mrf.mxu0
    %v1100 = vadd.f32 0.0, %v1099
    %1101 = vdwg.mxu0
    %1102 = vmatpush.msra.mxu0 %v1079
    %1103 = vmatpush.msra.mxu0 %v1075
    %1104 = vmatpush.msra.mxu0 %v1071
    %1105 = vmatpush.msra.mxu0 %v1067
    %1106 = vmatpush.msra.mxu0 %v1063
    %1107 = vmatpush.msra.mxu0 %v1059
    %1108 = vmatpush.msra.mxu0 %v1055
    %1109 = vmatpush.msra.mxu0 %v1051
    %1110 = vmatpush.msra.mxu0 %v1047
    %1111 = vmatpush.msra.mxu0 %v1043
    %1112 = vmatpush.msra.mxu0 %v1039
    %1113 = vmatpush.msra.mxu0 %v1035
    %1114 = vmatpush.msra.mxu0 %v1031
    %1115 = vmatpush.msra.mxu0 %v1027
    %1116 = vmatpush.msra.mxu0 %v1023
    %1117 = vmatpush.msra.mxu0 %v1019
    %1118 = vmatmul.f32.gmra.mxu0 %v1010
    %v1119 = vpop.f32.mrf.mxu0
    %v1120 = vadd.f32 0.0, %v1119
    %1121 = vdwg.mxu0
    %1122 = vmatpush.msra.mxu0 %v1080
    %1123 = vmatpush.msra.mxu0 %v1076
    %1124 = vmatpush.msra.mxu0 %v1072
    %1125 = vmatpush.msra.mxu0 %v1068
    %1126 = vmatpush.msra.mxu0 %v1064
    %1127 = vmatpush.msra.mxu0 %v1060
    %1128 = vmatpush.msra.mxu0 %v1056
    %1129 = vmatpush.msra.mxu0 %v1052
    %1130 = vmatpush.msra.mxu0 %v1048
    %1131 = vmatpush.msra.mxu0 %v1044
    %1132 = vmatpush.msra.mxu0 %v1040
    %1133 = vmatpush.msra.mxu0 %v1036
    %1134 = vmatpush.msra.mxu0 %v1032
    %1135 = vmatpush.msra.mxu0 %v1028
    %1136 = vmatpush.msra.mxu0 %v1024
    %1137 = vmatpush.msra.mxu0 %v1020
    %1138 = vmatmul.f32.gmra.mxu0 %v1010
    %v1139 = vpop.f32.mrf.mxu0
    %v1140 = vadd.f32 0.0, %v1139
    %1141 = vdwg.mxu0
    %1142 = vmatpush.msra.mxu0 %v1081
    %1143 = vmatpush.msra.mxu0 %v1077
    %1144 = vmatpush.msra.mxu0 %v1073
    %1145 = vmatpush.msra.mxu0 %v1069
    %1146 = vmatpush.msra.mxu0 %v1065
    %1147 = vmatpush.msra.mxu0 %v1061
    %1148 = vmatpush.msra.mxu0 %v1057
    %1149 = vmatpush.msra.mxu0 %v1053
    %1150 = vmatpush.msra.mxu0 %v1049
    %1151 = vmatpush.msra.mxu0 %v1045
    %1152 = vmatpush.msra.mxu0 %v1041
    %1153 = vmatpush.msra.mxu0 %v1037
    %1154 = vmatpush.msra.mxu0 %v1033
    %1155 = vmatpush.msra.mxu0 %v1029
    %1156 = vmatpush.msra.mxu0 %v1025
    %1157 = vmatpush.msra.mxu0 %v1021
    %1158 = vmatmul.f32.gmra.mxu0 %v1010
    %v1159 = vpop.f32.mrf.mxu0
    %v1160 = vadd.f32 0.0, %v1159
    %1161 = vdwg.mxu0
    %v1162 = vadd.f32 %v1014, %v1100
    %v1163 = vadd.f32 %v1015, %v1120
    %v1164 = vadd.f32 %v1016, %v1140
    %v1165 = vadd.f32 %v1017, %v1160
    %v1166 = vxor.u32 %v1162, 2147483648
    %v1167 = vmul.f32 %v1166, 1.442695
    %v1168 = vpow.pop %v1167
    %v1169 = vadd.f32 %v1168, 1.0
    %v1170 = vrcp.pop %v1169
    %v1171 = vmul.f32 %v1169, %v1170
    %v1172 = vsub.f32 1.0, %v1171
    %v1173 = vmul.f32 %v1170, %v1172
    %v1174 = vadd.f32 %v1170, %v1173
    %vm1175 = vweird.f32 %v1169
    %vm1176 = vweird.f32 %v1170
    %vm1177 = vmor %vm1175, %vm1176
    %v1178 = vsel %vm1177, %v1170, %v1174
    %v1179 = vand.u32 2147483647, %v1169
    %vm1180 = vcmp.eq.f32.partialorder %v1179, 8.507059e+37
    %v1181 = vand.u32 %v1169, 2147483648
    %v1182 = vor.u32 1.1754944e-38, %v1181
    %v1183 = vsel %vm1180, %v1182, %v1178
    %v1184 = vmul.f32 1.0, %v1183
    %v1185 = vxor.u32 %v1163, 2147483648
    %v1186 = vmul.f32 %v1185, 1.442695
    %v1187 = vpow.pop %v1186
    %v1188 = vadd.f32 %v1187, 1.0
    %v1189 = vrcp.pop %v1188
    %v1190 = vmul.f32 %v1188, %v1189
    %v1191 = vsub.f32 1.0, %v1190
    %v1192 = vmul.f32 %v1189, %v1191
    %v1193 = vadd.f32 %v1189, %v1192
    %vm1194 = vweird.f32 %v1188
    %vm1195 = vweird.f32 %v1189
    %vm1196 = vmor %vm1194, %vm1195
    %v1197 = vsel %vm1196, %v1189, %v1193
    %v1198 = vand.u32 2147483647, %v1188
    %vm1199 = vcmp.eq.f32.partialorder %v1198, 8.507059e+37
    %v1200 = vand.u32 %v1188, 2147483648
    %v1201 = vor.u32 1.1754944e-38, %v1200
    %v1202 = vsel %vm1199, %v1201, %v1197
    %v1203 = vmul.f32 1.0, %v1202
    %v1204 = vtanh.pop %v1164
    %v1205 = vxor.u32 %v1165, 2147483648
    %v1206 = vmul.f32 %v1205, 1.442695
    %v1207 = vpow.pop %v1206
    %v1208 = vadd.f32 %v1207, 1.0
    %v1209 = vrcp.pop %v1208
    %v1210 = vmul.f32 %v1208, %v1209
    %v1211 = vsub.f32 1.0, %v1210
    %v1212 = vmul.f32 %v1209, %v1211
    %v1213 = vadd.f32 %v1209, %v1212
    %vm1214 = vweird.f32 %v1208
    %vm1215 = vweird.f32 %v1209
    %vm1216 = vmor %vm1214, %vm1215
    %v1217 = vsel %vm1216, %v1209, %v1213
    %v1218 = vand.u32 2147483647, %v1208
    %vm1219 = vcmp.eq.f32.partialorder %v1218, 8.507059e+37
    %v1220 = vand.u32 %v1208, 2147483648
    %v1221 = vor.u32 1.1754944e-38, %v1220
    %v1222 = vsel %vm1219, %v1221, %v1217
    %v1223 = vmul.f32 1.0, %v1222
    %v1224 = vmul.f32 %v1203, %v1008
    %v1225 = vmul.f32 %v1184, %v1204
    %v1226 = vadd.f32 %v1224, %v1225
    %v1227 = vtanh.pop %v1226
    %v1228 = vmul.f32 %v1223, %v1227
    %s1229 = scalar_lea.vmem [#allocation11], 24
    %1230 = vst [vmem:[%s1229] sm:$0xff] %v1228
    %s1231 = scalar_lea.vmem [#allocation2], 128
    %v1232 = vld [vmem:[%s1231] sm:$0xff]
    %v1233 = vld [vmem:[%s1231 + $0x8] sm:$0xff]
    %v1234 = vld [vmem:[%s1231 + $0x10] sm:$0xff]
    %v1235 = vld [vmem:[%s1231 + $0x18] sm:$0xff]
    %v1236 = vld [vmem:[#allocation8] sm:$0xff]
    %v1237 = vld [vmem:[#allocation8 + $0x8] sm:$0xff]
    %v1238 = vld [vmem:[#allocation8 + $0x10] sm:$0xff]
    %v1239 = vld [vmem:[#allocation8 + $0x18] sm:$0xff]
    %v1240 = vld [vmem:[#allocation8 + $0x20] sm:$0xff]
    %v1241 = vld [vmem:[#allocation8 + $0x28] sm:$0xff]
    %v1242 = vld [vmem:[#allocation8 + $0x30] sm:$0xff]
    %v1243 = vld [vmem:[#allocation8 + $0x38] sm:$0xff]
    %v1244 = vld [vmem:[#allocation8 + $0x40] sm:$0xff]
    %v1245 = vld [vmem:[#allocation8 + $0x48] sm:$0xff]
    %v1246 = vld [vmem:[#allocation8 + $0x50] sm:$0xff]
    %v1247 = vld [vmem:[#allocation8 + $0x58] sm:$0xff]
    %v1248 = vld [vmem:[#allocation8 + $0x60] sm:$0xff]
    %v1249 = vld [vmem:[#allocation8 + $0x68] sm:$0xff]
    %v1250 = vld [vmem:[#allocation8 + $0x70] sm:$0xff]
    %v1251 = vld [vmem:[#allocation8 + $0x78] sm:$0xff]
    %v1252 = vld [vmem:[#allocation8 + $0x80] sm:$0xff]
    %v1253 = vld [vmem:[#allocation8 + $0x88] sm:$0xff]
    %v1254 = vld [vmem:[#allocation8 + $0x90] sm:$0xff]
    %v1255 = vld [vmem:[#allocation8 + $0x98] sm:$0xff]
    %v1256 = vld [vmem:[#allocation8 + $0xa0] sm:$0xff]
    %v1257 = vld [vmem:[#allocation8 + $0xa8] sm:$0xff]
    %v1258 = vld [vmem:[#allocation8 + $0xb0] sm:$0xff]
    %v1259 = vld [vmem:[#allocation8 + $0xb8] sm:$0xff]
    %v1260 = vld [vmem:[#allocation8 + $0xc0] sm:$0xff]
    %v1261 = vld [vmem:[#allocation8 + $0xc8] sm:$0xff]
    %v1262 = vld [vmem:[#allocation8 + $0xd0] sm:$0xff]
    %v1263 = vld [vmem:[#allocation8 + $0xd8] sm:$0xff]
    %v1264 = vld [vmem:[#allocation8 + $0xe0] sm:$0xff]
    %v1265 = vld [vmem:[#allocation8 + $0xe8] sm:$0xff]
    %v1266 = vld [vmem:[#allocation8 + $0xf0] sm:$0xff]
    %v1267 = vld [vmem:[#allocation8 + $0xf8] sm:$0xff]
    %v1268 = vld [vmem:[#allocation8 + $0x100] sm:$0xff]
    %v1269 = vld [vmem:[#allocation8 + $0x108] sm:$0xff]
    %v1270 = vld [vmem:[#allocation8 + $0x110] sm:$0xff]
    %v1271 = vld [vmem:[#allocation8 + $0x118] sm:$0xff]
    %v1272 = vld [vmem:[#allocation8 + $0x120] sm:$0xff]
    %v1273 = vld [vmem:[#allocation8 + $0x128] sm:$0xff]
    %v1274 = vld [vmem:[#allocation8 + $0x130] sm:$0xff]
    %v1275 = vld [vmem:[#allocation8 + $0x138] sm:$0xff]
    %v1276 = vld [vmem:[#allocation8 + $0x140] sm:$0xff]
    %v1277 = vld [vmem:[#allocation8 + $0x148] sm:$0xff]
    %v1278 = vld [vmem:[#allocation8 + $0x150] sm:$0xff]
    %v1279 = vld [vmem:[#allocation8 + $0x158] sm:$0xff]
    %v1280 = vld [vmem:[#allocation8 + $0x160] sm:$0xff]
    %v1281 = vld [vmem:[#allocation8 + $0x168] sm:$0xff]
    %v1282 = vld [vmem:[#allocation8 + $0x170] sm:$0xff]
    %v1283 = vld [vmem:[#allocation8 + $0x178] sm:$0xff]
    %v1284 = vld [vmem:[#allocation8 + $0x180] sm:$0xff]
    %v1285 = vld [vmem:[#allocation8 + $0x188] sm:$0xff]
    %v1286 = vld [vmem:[#allocation8 + $0x190] sm:$0xff]
    %v1287 = vld [vmem:[#allocation8 + $0x198] sm:$0xff]
    %v1288 = vld [vmem:[#allocation8 + $0x1a0] sm:$0xff]
    %v1289 = vld [vmem:[#allocation8 + $0x1a8] sm:$0xff]
    %v1290 = vld [vmem:[#allocation8 + $0x1b0] sm:$0xff]
    %v1291 = vld [vmem:[#allocation8 + $0x1b8] sm:$0xff]
    %v1292 = vld [vmem:[#allocation8 + $0x1c0] sm:$0xff]
    %v1293 = vld [vmem:[#allocation8 + $0x1c8] sm:$0xff]
    %v1294 = vld [vmem:[#allocation8 + $0x1d0] sm:$0xff]
    %v1295 = vld [vmem:[#allocation8 + $0x1d8] sm:$0xff]
    %v1296 = vld [vmem:[#allocation8 + $0x1e0] sm:$0xff]
    %v1297 = vld [vmem:[#allocation8 + $0x1e8] sm:$0xff]
    %v1298 = vld [vmem:[#allocation8 + $0x1f0] sm:$0xff]
    %v1299 = vld [vmem:[#allocation8 + $0x1f8] sm:$0xff]
    %1300 = vmatpush.msra.mxu0 %v1296
    %1301 = vmatpush.msra.mxu0 %v1292
    %1302 = vmatpush.msra.mxu0 %v1288
    %1303 = vmatpush.msra.mxu0 %v1284
    %1304 = vmatpush.msra.mxu0 %v1280
    %1305 = vmatpush.msra.mxu0 %v1276
    %1306 = vmatpush.msra.mxu0 %v1272
    %1307 = vmatpush.msra.mxu0 %v1268
    %1308 = vmatpush.msra.mxu0 %v1264
    %1309 = vmatpush.msra.mxu0 %v1260
    %1310 = vmatpush.msra.mxu0 %v1256
    %1311 = vmatpush.msra.mxu0 %v1252
    %1312 = vmatpush.msra.mxu0 %v1248
    %1313 = vmatpush.msra.mxu0 %v1244
    %1314 = vmatpush.msra.mxu0 %v1240
    %1315 = vmatpush.msra.mxu0 %v1236
    %1316 = vmatmul.f32.gmra.mxu0 %v1228
    %v1317 = vpop.f32.mrf.mxu0
    %v1318 = vadd.f32 0.0, %v1317
    %1319 = vdwg.mxu0
    %1320 = vmatpush.msra.mxu0 %v1297
    %1321 = vmatpush.msra.mxu0 %v1293
    %1322 = vmatpush.msra.mxu0 %v1289
    %1323 = vmatpush.msra.mxu0 %v1285
    %1324 = vmatpush.msra.mxu0 %v1281
    %1325 = vmatpush.msra.mxu0 %v1277
    %1326 = vmatpush.msra.mxu0 %v1273
    %1327 = vmatpush.msra.mxu0 %v1269
    %1328 = vmatpush.msra.mxu0 %v1265
    %1329 = vmatpush.msra.mxu0 %v1261
    %1330 = vmatpush.msra.mxu0 %v1257
    %1331 = vmatpush.msra.mxu0 %v1253
    %1332 = vmatpush.msra.mxu0 %v1249
    %1333 = vmatpush.msra.mxu0 %v1245
    %1334 = vmatpush.msra.mxu0 %v1241
    %1335 = vmatpush.msra.mxu0 %v1237
    %1336 = vmatmul.f32.gmra.mxu0 %v1228
    %v1337 = vpop.f32.mrf.mxu0
    %v1338 = vadd.f32 0.0, %v1337
    %1339 = vdwg.mxu0
    %1340 = vmatpush.msra.mxu0 %v1298
    %1341 = vmatpush.msra.mxu0 %v1294
    %1342 = vmatpush.msra.mxu0 %v1290
    %1343 = vmatpush.msra.mxu0 %v1286
    %1344 = vmatpush.msra.mxu0 %v1282
    %1345 = vmatpush.msra.mxu0 %v1278
    %1346 = vmatpush.msra.mxu0 %v1274
    %1347 = vmatpush.msra.mxu0 %v1270
    %1348 = vmatpush.msra.mxu0 %v1266
    %1349 = vmatpush.msra.mxu0 %v1262
    %1350 = vmatpush.msra.mxu0 %v1258
    %1351 = vmatpush.msra.mxu0 %v1254
    %1352 = vmatpush.msra.mxu0 %v1250
    %1353 = vmatpush.msra.mxu0 %v1246
    %1354 = vmatpush.msra.mxu0 %v1242
    %1355 = vmatpush.msra.mxu0 %v1238
    %1356 = vmatmul.f32.gmra.mxu0 %v1228
    %v1357 = vpop.f32.mrf.mxu0
    %v1358 = vadd.f32 0.0, %v1357
    %1359 = vdwg.mxu0
    %1360 = vmatpush.msra.mxu0 %v1299
    %1361 = vmatpush.msra.mxu0 %v1295
    %1362 = vmatpush.msra.mxu0 %v1291
    %1363 = vmatpush.msra.mxu0 %v1287
    %1364 = vmatpush.msra.mxu0 %v1283
    %1365 = vmatpush.msra.mxu0 %v1279
    %1366 = vmatpush.msra.mxu0 %v1275
    %1367 = vmatpush.msra.mxu0 %v1271
    %1368 = vmatpush.msra.mxu0 %v1267
    %1369 = vmatpush.msra.mxu0 %v1263
    %1370 = vmatpush.msra.mxu0 %v1259
    %1371 = vmatpush.msra.mxu0 %v1255
    %1372 = vmatpush.msra.mxu0 %v1251
    %1373 = vmatpush.msra.mxu0 %v1247
    %1374 = vmatpush.msra.mxu0 %v1243
    %1375 = vmatpush.msra.mxu0 %v1239
    %1376 = vmatmul.f32.gmra.mxu0 %v1228
    %v1377 = vpop.f32.mrf.mxu0
    %v1378 = vadd.f32 0.0, %v1377
    %1379 = vdwg.mxu0
    %v1380 = vadd.f32 %v1232, %v1318
    %v1381 = vadd.f32 %v1233, %v1338
    %v1382 = vadd.f32 %v1234, %v1358
    %v1383 = vadd.f32 %v1235, %v1378
    %v1384 = vxor.u32 %v1380, 2147483648
    %v1385 = vmul.f32 %v1384, 1.442695
    %v1386 = vpow.pop %v1385
    %v1387 = vadd.f32 %v1386, 1.0
    %v1388 = vrcp.pop %v1387
    %v1389 = vmul.f32 %v1387, %v1388
    %v1390 = vsub.f32 1.0, %v1389
    %v1391 = vmul.f32 %v1388, %v1390
    %v1392 = vadd.f32 %v1388, %v1391
    %vm1393 = vweird.f32 %v1387
    %vm1394 = vweird.f32 %v1388
    %vm1395 = vmor %vm1393, %vm1394
    %v1396 = vsel %vm1395, %v1388, %v1392
    %v1397 = vand.u32 2147483647, %v1387
    %vm1398 = vcmp.eq.f32.partialorder %v1397, 8.507059e+37
    %v1399 = vand.u32 %v1387, 2147483648
    %v1400 = vor.u32 1.1754944e-38, %v1399
    %v1401 = vsel %vm1398, %v1400, %v1396
    %v1402 = vmul.f32 1.0, %v1401
    %v1403 = vxor.u32 %v1381, 2147483648
    %v1404 = vmul.f32 %v1403, 1.442695
    %v1405 = vpow.pop %v1404
    %v1406 = vadd.f32 %v1405, 1.0
    %v1407 = vrcp.pop %v1406
    %v1408 = vmul.f32 %v1406, %v1407
    %v1409 = vsub.f32 1.0, %v1408
    %v1410 = vmul.f32 %v1407, %v1409
    %v1411 = vadd.f32 %v1407, %v1410
    %vm1412 = vweird.f32 %v1406
    %vm1413 = vweird.f32 %v1407
    %vm1414 = vmor %vm1412, %vm1413
    %v1415 = vsel %vm1414, %v1407, %v1411
    %v1416 = vand.u32 2147483647, %v1406
    %vm1417 = vcmp.eq.f32.partialorder %v1416, 8.507059e+37
    %v1418 = vand.u32 %v1406, 2147483648
    %v1419 = vor.u32 1.1754944e-38, %v1418
    %v1420 = vsel %vm1417, %v1419, %v1415
    %v1421 = vmul.f32 1.0, %v1420
    %v1422 = vtanh.pop %v1382
    %v1423 = vxor.u32 %v1383, 2147483648
    %v1424 = vmul.f32 %v1423, 1.442695
    %v1425 = vpow.pop %v1424
    %v1426 = vadd.f32 %v1425, 1.0
    %v1427 = vrcp.pop %v1426
    %v1428 = vmul.f32 %v1426, %v1427
    %v1429 = vsub.f32 1.0, %v1428
    %v1430 = vmul.f32 %v1427, %v1429
    %v1431 = vadd.f32 %v1427, %v1430
    %vm1432 = vweird.f32 %v1426
    %vm1433 = vweird.f32 %v1427
    %vm1434 = vmor %vm1432, %vm1433
    %v1435 = vsel %vm1434, %v1427, %v1431
    %v1436 = vand.u32 2147483647, %v1426
    %vm1437 = vcmp.eq.f32.partialorder %v1436, 8.507059e+37
    %v1438 = vand.u32 %v1426, 2147483648
    %v1439 = vor.u32 1.1754944e-38, %v1438
    %v1440 = vsel %vm1437, %v1439, %v1435
    %v1441 = vmul.f32 1.0, %v1440
    %v1442 = vmul.f32 %v1421, %v1226
    %v1443 = vmul.f32 %v1402, %v1422
    %v1444 = vadd.f32 %v1442, %v1443
    %v1445 = vtanh.pop %v1444
    %v1446 = vmul.f32 %v1441, %v1445
    %s1447 = scalar_lea.vmem [#allocation11], 32
    %1448 = vst [vmem:[%s1447] sm:$0xff] %v1446
    %s1449 = scalar_lea.vmem [#allocation2], 160
    %v1450 = vld [vmem:[%s1449] sm:$0xff]
    %v1451 = vld [vmem:[%s1449 + $0x8] sm:$0xff]
    %v1452 = vld [vmem:[%s1449 + $0x10] sm:$0xff]
    %v1453 = vld [vmem:[%s1449 + $0x18] sm:$0xff]
    %v1454 = vld [vmem:[#allocation8] sm:$0xff]
    %v1455 = vld [vmem:[#allocation8 + $0x8] sm:$0xff]
    %v1456 = vld [vmem:[#allocation8 + $0x10] sm:$0xff]
    %v1457 = vld [vmem:[#allocation8 + $0x18] sm:$0xff]
    %v1458 = vld [vmem:[#allocation8 + $0x20] sm:$0xff]
    %v1459 = vld [vmem:[#allocation8 + $0x28] sm:$0xff]
    %v1460 = vld [vmem:[#allocation8 + $0x30] sm:$0xff]
    %v1461 = vld [vmem:[#allocation8 + $0x38] sm:$0xff]
    %v1462 = vld [vmem:[#allocation8 + $0x40] sm:$0xff]
    %v1463 = vld [vmem:[#allocation8 + $0x48] sm:$0xff]
    %v1464 = vld [vmem:[#allocation8 + $0x50] sm:$0xff]
    %v1465 = vld [vmem:[#allocation8 + $0x58] sm:$0xff]
    %v1466 = vld [vmem:[#allocation8 + $0x60] sm:$0xff]
    %v1467 = vld [vmem:[#allocation8 + $0x68] sm:$0xff]
    %v1468 = vld [vmem:[#allocation8 + $0x70] sm:$0xff]
    %v1469 = vld [vmem:[#allocation8 + $0x78] sm:$0xff]
    %v1470 = vld [vmem:[#allocation8 + $0x80] sm:$0xff]
    %v1471 = vld [vmem:[#allocation8 + $0x88] sm:$0xff]
    %v1472 = vld [vmem:[#allocation8 + $0x90] sm:$0xff]
    %v1473 = vld [vmem:[#allocation8 + $0x98] sm:$0xff]
    %v1474 = vld [vmem:[#allocation8 + $0xa0] sm:$0xff]
    %v1475 = vld [vmem:[#allocation8 + $0xa8] sm:$0xff]
    %v1476 = vld [vmem:[#allocation8 + $0xb0] sm:$0xff]
    %v1477 = vld [vmem:[#allocation8 + $0xb8] sm:$0xff]
    %v1478 = vld [vmem:[#allocation8 + $0xc0] sm:$0xff]
    %v1479 = vld [vmem:[#allocation8 + $0xc8] sm:$0xff]
    %v1480 = vld [vmem:[#allocation8 + $0xd0] sm:$0xff]
    %v1481 = vld [vmem:[#allocation8 + $0xd8] sm:$0xff]
    %v1482 = vld [vmem:[#allocation8 + $0xe0] sm:$0xff]
    %v1483 = vld [vmem:[#allocation8 + $0xe8] sm:$0xff]
    %v1484 = vld [vmem:[#allocation8 + $0xf0] sm:$0xff]
    %v1485 = vld [vmem:[#allocation8 + $0xf8] sm:$0xff]
    %v1486 = vld [vmem:[#allocation8 + $0x100] sm:$0xff]
    %v1487 = vld [vmem:[#allocation8 + $0x108] sm:$0xff]
    %v1488 = vld [vmem:[#allocation8 + $0x110] sm:$0xff]
    %v1489 = vld [vmem:[#allocation8 + $0x118] sm:$0xff]
    %v1490 = vld [vmem:[#allocation8 + $0x120] sm:$0xff]
    %v1491 = vld [vmem:[#allocation8 + $0x128] sm:$0xff]
    %v1492 = vld [vmem:[#allocation8 + $0x130] sm:$0xff]
    %v1493 = vld [vmem:[#allocation8 + $0x138] sm:$0xff]
    %v1494 = vld [vmem:[#allocation8 + $0x140] sm:$0xff]
    %v1495 = vld [vmem:[#allocation8 + $0x148] sm:$0xff]
    %v1496 = vld [vmem:[#allocation8 + $0x150] sm:$0xff]
    %v1497 = vld [vmem:[#allocation8 + $0x158] sm:$0xff]
    %v1498 = vld [vmem:[#allocation8 + $0x160] sm:$0xff]
    %v1499 = vld [vmem:[#allocation8 + $0x168] sm:$0xff]
    %v1500 = vld [vmem:[#allocation8 + $0x170] sm:$0xff]
    %v1501 = vld [vmem:[#allocation8 + $0x178] sm:$0xff]
    %v1502 = vld [vmem:[#allocation8 + $0x180] sm:$0xff]
    %v1503 = vld [vmem:[#allocation8 + $0x188] sm:$0xff]
    %v1504 = vld [vmem:[#allocation8 + $0x190] sm:$0xff]
    %v1505 = vld [vmem:[#allocation8 + $0x198] sm:$0xff]
    %v1506 = vld [vmem:[#allocation8 + $0x1a0] sm:$0xff]
    %v1507 = vld [vmem:[#allocation8 + $0x1a8] sm:$0xff]
    %v1508 = vld [vmem:[#allocation8 + $0x1b0] sm:$0xff]
    %v1509 = vld [vmem:[#allocation8 + $0x1b8] sm:$0xff]
    %v1510 = vld [vmem:[#allocation8 + $0x1c0] sm:$0xff]
    %v1511 = vld [vmem:[#allocation8 + $0x1c8] sm:$0xff]
    %v1512 = vld [vmem:[#allocation8 + $0x1d0] sm:$0xff]
    %v1513 = vld [vmem:[#allocation8 + $0x1d8] sm:$0xff]
    %v1514 = vld [vmem:[#allocation8 + $0x1e0] sm:$0xff]
    %v1515 = vld [vmem:[#allocation8 + $0x1e8] sm:$0xff]
    %v1516 = vld [vmem:[#allocation8 + $0x1f0] sm:$0xff]
    %v1517 = vld [vmem:[#allocation8 + $0x1f8] sm:$0xff]
    %1518 = vmatpush.msra.mxu0 %v1514
    %1519 = vmatpush.msra.mxu0 %v1510
    %1520 = vmatpush.msra.mxu0 %v1506
    %1521 = vmatpush.msra.mxu0 %v1502
    %1522 = vmatpush.msra.mxu0 %v1498
    %1523 = vmatpush.msra.mxu0 %v1494
    %1524 = vmatpush.msra.mxu0 %v1490
    %1525 = vmatpush.msra.mxu0 %v1486
    %1526 = vmatpush.msra.mxu0 %v1482
    %1527 = vmatpush.msra.mxu0 %v1478
    %1528 = vmatpush.msra.mxu0 %v1474
    %1529 = vmatpush.msra.mxu0 %v1470
    %1530 = vmatpush.msra.mxu0 %v1466
    %1531 = vmatpush.msra.mxu0 %v1462
    %1532 = vmatpush.msra.mxu0 %v1458
    %1533 = vmatpush.msra.mxu0 %v1454
    %1534 = vmatmul.f32.gmra.mxu0 %v1446
    %v1535 = vpop.f32.mrf.mxu0
    %v1536 = vadd.f32 0.0, %v1535
    %1537 = vdwg.mxu0
    %1538 = vmatpush.msra.mxu0 %v1515
    %1539 = vmatpush.msra.mxu0 %v1511
    %1540 = vmatpush.msra.mxu0 %v1507
    %1541 = vmatpush.msra.mxu0 %v1503
    %1542 = vmatpush.msra.mxu0 %v1499
    %1543 = vmatpush.msra.mxu0 %v1495
    %1544 = vmatpush.msra.mxu0 %v1491
    %1545 = vmatpush.msra.mxu0 %v1487
    %1546 = vmatpush.msra.mxu0 %v1483
    %1547 = vmatpush.msra.mxu0 %v1479
    %1548 = vmatpush.msra.mxu0 %v1475
    %1549 = vmatpush.msra.mxu0 %v1471
    %1550 = vmatpush.msra.mxu0 %v1467
    %1551 = vmatpush.msra.mxu0 %v1463
    %1552 = vmatpush.msra.mxu0 %v1459
    %1553 = vmatpush.msra.mxu0 %v1455
    %1554 = vmatmul.f32.gmra.mxu0 %v1446
    %v1555 = vpop.f32.mrf.mxu0
    %v1556 = vadd.f32 0.0, %v1555
    %1557 = vdwg.mxu0
    %1558 = vmatpush.msra.mxu0 %v1516
    %1559 = vmatpush.msra.mxu0 %v1512
    %1560 = vmatpush.msra.mxu0 %v1508
    %1561 = vmatpush.msra.mxu0 %v1504
    %1562 = vmatpush.msra.mxu0 %v1500
    %1563 = vmatpush.msra.mxu0 %v1496
    %1564 = vmatpush.msra.mxu0 %v1492
    %1565 = vmatpush.msra.mxu0 %v1488
    %1566 = vmatpush.msra.mxu0 %v1484
    %1567 = vmatpush.msra.mxu0 %v1480
    %1568 = vmatpush.msra.mxu0 %v1476
    %1569 = vmatpush.msra.mxu0 %v1472
    %1570 = vmatpush.msra.mxu0 %v1468
    %1571 = vmatpush.msra.mxu0 %v1464
    %1572 = vmatpush.msra.mxu0 %v1460
    %1573 = vmatpush.msra.mxu0 %v1456
    %1574 = vmatmul.f32.gmra.mxu0 %v1446
    %v1575 = vpop.f32.mrf.mxu0
    %v1576 = vadd.f32 0.0, %v1575
    %1577 = vdwg.mxu0
    %1578 = vmatpush.msra.mxu0 %v1517
    %1579 = vmatpush.msra.mxu0 %v1513
    %1580 = vmatpush.msra.mxu0 %v1509
    %1581 = vmatpush.msra.mxu0 %v1505
    %1582 = vmatpush.msra.mxu0 %v1501
    %1583 = vmatpush.msra.mxu0 %v1497
    %1584 = vmatpush.msra.mxu0 %v1493
    %1585 = vmatpush.msra.mxu0 %v1489
    %1586 = vmatpush.msra.mxu0 %v1485
    %1587 = vmatpush.msra.mxu0 %v1481
    %1588 = vmatpush.msra.mxu0 %v1477
    %1589 = vmatpush.msra.mxu0 %v1473
    %1590 = vmatpush.msra.mxu0 %v1469
    %1591 = vmatpush.msra.mxu0 %v1465
    %1592 = vmatpush.msra.mxu0 %v1461
    %1593 = vmatpush.msra.mxu0 %v1457
    %1594 = vmatmul.f32.gmra.mxu0 %v1446
    %v1595 = vpop.f32.mrf.mxu0
    %v1596 = vadd.f32 0.0, %v1595
    %1597 = vdwg.mxu0
    %v1598 = vadd.f32 %v1450, %v1536
    %v1599 = vadd.f32 %v1451, %v1556
    %v1600 = vadd.f32 %v1452, %v1576
    %v1601 = vadd.f32 %v1453, %v1596
    %v1602 = vxor.u32 %v1598, 2147483648
    %v1603 = vmul.f32 %v1602, 1.442695
    %v1604 = vpow.pop %v1603
    %v1605 = vadd.f32 %v1604, 1.0
    %v1606 = vrcp.pop %v1605
    %v1607 = vmul.f32 %v1605, %v1606
    %v1608 = vsub.f32 1.0, %v1607
    %v1609 = vmul.f32 %v1606, %v1608
    %v1610 = vadd.f32 %v1606, %v1609
    %vm1611 = vweird.f32 %v1605
    %vm1612 = vweird.f32 %v1606
    %vm1613 = vmor %vm1611, %vm1612
    %v1614 = vsel %vm1613, %v1606, %v1610
    %v1615 = vand.u32 2147483647, %v1605
    %vm1616 = vcmp.eq.f32.partialorder %v1615, 8.507059e+37
    %v1617 = vand.u32 %v1605, 2147483648
    %v1618 = vor.u32 1.1754944e-38, %v1617
    %v1619 = vsel %vm1616, %v1618, %v1614
    %v1620 = vmul.f32 1.0, %v1619
    %v1621 = vxor.u32 %v1599, 2147483648
    %v1622 = vmul.f32 %v1621, 1.442695
    %v1623 = vpow.pop %v1622
    %v1624 = vadd.f32 %v1623, 1.0
    %v1625 = vrcp.pop %v1624
    %v1626 = vmul.f32 %v1624, %v1625
    %v1627 = vsub.f32 1.0, %v1626
    %v1628 = vmul.f32 %v1625, %v1627
    %v1629 = vadd.f32 %v1625, %v1628
    %vm1630 = vweird.f32 %v1624
    %vm1631 = vweird.f32 %v1625
    %vm1632 = vmor %vm1630, %vm1631
    %v1633 = vsel %vm1632, %v1625, %v1629
    %v1634 = vand.u32 2147483647, %v1624
    %vm1635 = vcmp.eq.f32.partialorder %v1634, 8.507059e+37
    %v1636 = vand.u32 %v1624, 2147483648
    %v1637 = vor.u32 1.1754944e-38, %v1636
    %v1638 = vsel %vm1635, %v1637, %v1633
    %v1639 = vmul.f32 1.0, %v1638
    %v1640 = vtanh.pop %v1600
    %v1641 = vxor.u32 %v1601, 2147483648
    %v1642 = vmul.f32 %v1641, 1.442695
    %v1643 = vpow.pop %v1642
    %v1644 = vadd.f32 %v1643, 1.0
    %v1645 = vrcp.pop %v1644
    %v1646 = vmul.f32 %v1644, %v1645
    %v1647 = vsub.f32 1.0, %v1646
    %v1648 = vmul.f32 %v1645, %v1647
    %v1649 = vadd.f32 %v1645, %v1648
    %vm1650 = vweird.f32 %v1644
    %vm1651 = vweird.f32 %v1645
    %vm1652 = vmor %vm1650, %vm1651
    %v1653 = vsel %vm1652, %v1645, %v1649
    %v1654 = vand.u32 2147483647, %v1644
    %vm1655 = vcmp.eq.f32.partialorder %v1654, 8.507059e+37
    %v1656 = vand.u32 %v1644, 2147483648
    %v1657 = vor.u32 1.1754944e-38, %v1656
    %v1658 = vsel %vm1655, %v1657, %v1653
    %v1659 = vmul.f32 1.0, %v1658
    %v1660 = vmul.f32 %v1639, %v1444
    %v1661 = vmul.f32 %v1620, %v1640
    %v1662 = vadd.f32 %v1660, %v1661
    %v1663 = vtanh.pop %v1662
    %v1664 = vmul.f32 %v1659, %v1663
    %s1665 = scalar_lea.vmem [#allocation11], 40
    %1666 = vst [vmem:[%s1665] sm:$0xff] %v1664
    %s1667 = scalar_lea.vmem [#allocation2], 192
    %v1668 = vld [vmem:[%s1667] sm:$0xff]
    %v1669 = vld [vmem:[%s1667 + $0x8] sm:$0xff]
    %v1670 = vld [vmem:[%s1667 + $0x10] sm:$0xff]
    %v1671 = vld [vmem:[%s1667 + $0x18] sm:$0xff]
    %v1672 = vld [vmem:[#allocation8] sm:$0xff]
    %v1673 = vld [vmem:[#allocation8 + $0x8] sm:$0xff]
    %v1674 = vld [vmem:[#allocation8 + $0x10] sm:$0xff]
    %v1675 = vld [vmem:[#allocation8 + $0x18] sm:$0xff]
    %v1676 = vld [vmem:[#allocation8 + $0x20] sm:$0xff]
    %v1677 = vld [vmem:[#allocation8 + $0x28] sm:$0xff]
    %v1678 = vld [vmem:[#allocation8 + $0x30] sm:$0xff]
    %v1679 = vld [vmem:[#allocation8 + $0x38] sm:$0xff]
    %v1680 = vld [vmem:[#allocation8 + $0x40] sm:$0xff]
    %v1681 = vld [vmem:[#allocation8 + $0x48] sm:$0xff]
    %v1682 = vld [vmem:[#allocation8 + $0x50] sm:$0xff]
    %v1683 = vld [vmem:[#allocation8 + $0x58] sm:$0xff]
    %v1684 = vld [vmem:[#allocation8 + $0x60] sm:$0xff]
    %v1685 = vld [vmem:[#allocation8 + $0x68] sm:$0xff]
    %v1686 = vld [vmem:[#allocation8 + $0x70] sm:$0xff]
    %v1687 = vld [vmem:[#allocation8 + $0x78] sm:$0xff]
    %v1688 = vld [vmem:[#allocation8 + $0x80] sm:$0xff]
    %v1689 = vld [vmem:[#allocation8 + $0x88] sm:$0xff]
    %v1690 = vld [vmem:[#allocation8 + $0x90] sm:$0xff]
    %v1691 = vld [vmem:[#allocation8 + $0x98] sm:$0xff]
    %v1692 = vld [vmem:[#allocation8 + $0xa0] sm:$0xff]
    %v1693 = vld [vmem:[#allocation8 + $0xa8] sm:$0xff]
    %v1694 = vld [vmem:[#allocation8 + $0xb0] sm:$0xff]
    %v1695 = vld [vmem:[#allocation8 + $0xb8] sm:$0xff]
    %v1696 = vld [vmem:[#allocation8 + $0xc0] sm:$0xff]
    %v1697 = vld [vmem:[#allocation8 + $0xc8] sm:$0xff]
    %v1698 = vld [vmem:[#allocation8 + $0xd0] sm:$0xff]
    %v1699 = vld [vmem:[#allocation8 + $0xd8] sm:$0xff]
    %v1700 = vld [vmem:[#allocation8 + $0xe0] sm:$0xff]
    %v1701 = vld [vmem:[#allocation8 + $0xe8] sm:$0xff]
    %v1702 = vld [vmem:[#allocation8 + $0xf0] sm:$0xff]
    %v1703 = vld [vmem:[#allocation8 + $0xf8] sm:$0xff]
    %v1704 = vld [vmem:[#allocation8 + $0x100] sm:$0xff]
    %v1705 = vld [vmem:[#allocation8 + $0x108] sm:$0xff]
    %v1706 = vld [vmem:[#allocation8 + $0x110] sm:$0xff]
    %v1707 = vld [vmem:[#allocation8 + $0x118] sm:$0xff]
    %v1708 = vld [vmem:[#allocation8 + $0x120] sm:$0xff]
    %v1709 = vld [vmem:[#allocation8 + $0x128] sm:$0xff]
    %v1710 = vld [vmem:[#allocation8 + $0x130] sm:$0xff]
    %v1711 = vld [vmem:[#allocation8 + $0x138] sm:$0xff]
    %v1712 = vld [vmem:[#allocation8 + $0x140] sm:$0xff]
    %v1713 = vld [vmem:[#allocation8 + $0x148] sm:$0xff]
    %v1714 = vld [vmem:[#allocation8 + $0x150] sm:$0xff]
    %v1715 = vld [vmem:[#allocation8 + $0x158] sm:$0xff]
    %v1716 = vld [vmem:[#allocation8 + $0x160] sm:$0xff]
    %v1717 = vld [vmem:[#allocation8 + $0x168] sm:$0xff]
    %v1718 = vld [vmem:[#allocation8 + $0x170] sm:$0xff]
    %v1719 = vld [vmem:[#allocation8 + $0x178] sm:$0xff]
    %v1720 = vld [vmem:[#allocation8 + $0x180] sm:$0xff]
    %v1721 = vld [vmem:[#allocation8 + $0x188] sm:$0xff]
    %v1722 = vld [vmem:[#allocation8 + $0x190] sm:$0xff]
    %v1723 = vld [vmem:[#allocation8 + $0x198] sm:$0xff]
    %v1724 = vld [vmem:[#allocation8 + $0x1a0] sm:$0xff]
    %v1725 = vld [vmem:[#allocation8 + $0x1a8] sm:$0xff]
    %v1726 = vld [vmem:[#allocation8 + $0x1b0] sm:$0xff]
    %v1727 = vld [vmem:[#allocation8 + $0x1b8] sm:$0xff]
    %v1728 = vld [vmem:[#allocation8 + $0x1c0] sm:$0xff]
    %v1729 = vld [vmem:[#allocation8 + $0x1c8] sm:$0xff]
    %v1730 = vld [vmem:[#allocation8 + $0x1d0] sm:$0xff]
    %v1731 = vld [vmem:[#allocation8 + $0x1d8] sm:$0xff]
    %v1732 = vld [vmem:[#allocation8 + $0x1e0] sm:$0xff]
    %v1733 = vld [vmem:[#allocation8 + $0x1e8] sm:$0xff]
    %v1734 = vld [vmem:[#allocation8 + $0x1f0] sm:$0xff]
    %v1735 = vld [vmem:[#allocation8 + $0x1f8] sm:$0xff]
    %1736 = vmatpush.msra.mxu0 %v1732
    %1737 = vmatpush.msra.mxu0 %v1728
    %1738 = vmatpush.msra.mxu0 %v1724
    %1739 = vmatpush.msra.mxu0 %v1720
    %1740 = vmatpush.msra.mxu0 %v1716
    %1741 = vmatpush.msra.mxu0 %v1712
    %1742 = vmatpush.msra.mxu0 %v1708
    %1743 = vmatpush.msra.mxu0 %v1704
    %1744 = vmatpush.msra.mxu0 %v1700
    %1745 = vmatpush.msra.mxu0 %v1696
    %1746 = vmatpush.msra.mxu0 %v1692
    %1747 = vmatpush.msra.mxu0 %v1688
    %1748 = vmatpush.msra.mxu0 %v1684
    %1749 = vmatpush.msra.mxu0 %v1680
    %1750 = vmatpush.msra.mxu0 %v1676
    %1751 = vmatpush.msra.mxu0 %v1672
    %1752 = vmatmul.f32.gmra.mxu0 %v1664
    %v1753 = vpop.f32.mrf.mxu0
    %v1754 = vadd.f32 0.0, %v1753
    %1755 = vdwg.mxu0
    %1756 = vmatpush.msra.mxu0 %v1733
    %1757 = vmatpush.msra.mxu0 %v1729
    %1758 = vmatpush.msra.mxu0 %v1725
    %1759 = vmatpush.msra.mxu0 %v1721
    %1760 = vmatpush.msra.mxu0 %v1717
    %1761 = vmatpush.msra.mxu0 %v1713
    %1762 = vmatpush.msra.mxu0 %v1709
    %1763 = vmatpush.msra.mxu0 %v1705
    %1764 = vmatpush.msra.mxu0 %v1701
    %1765 = vmatpush.msra.mxu0 %v1697
    %1766 = vmatpush.msra.mxu0 %v1693
    %1767 = vmatpush.msra.mxu0 %v1689
    %1768 = vmatpush.msra.mxu0 %v1685
    %1769 = vmatpush.msra.mxu0 %v1681
    %1770 = vmatpush.msra.mxu0 %v1677
    %1771 = vmatpush.msra.mxu0 %v1673
    %1772 = vmatmul.f32.gmra.mxu0 %v1664
    %v1773 = vpop.f32.mrf.mxu0
    %v1774 = vadd.f32 0.0, %v1773
    %1775 = vdwg.mxu0
    %1776 = vmatpush.msra.mxu0 %v1734
    %1777 = vmatpush.msra.mxu0 %v1730
    %1778 = vmatpush.msra.mxu0 %v1726
    %1779 = vmatpush.msra.mxu0 %v1722
    %1780 = vmatpush.msra.mxu0 %v1718
    %1781 = vmatpush.msra.mxu0 %v1714
    %1782 = vmatpush.msra.mxu0 %v1710
    %1783 = vmatpush.msra.mxu0 %v1706
    %1784 = vmatpush.msra.mxu0 %v1702
    %1785 = vmatpush.msra.mxu0 %v1698
    %1786 = vmatpush.msra.mxu0 %v1694
    %1787 = vmatpush.msra.mxu0 %v1690
    %1788 = vmatpush.msra.mxu0 %v1686
    %1789 = vmatpush.msra.mxu0 %v1682
    %1790 = vmatpush.msra.mxu0 %v1678
    %1791 = vmatpush.msra.mxu0 %v1674
    %1792 = vmatmul.f32.gmra.mxu0 %v1664
    %v1793 = vpop.f32.mrf.mxu0
    %v1794 = vadd.f32 0.0, %v1793
    %1795 = vdwg.mxu0
    %1796 = vmatpush.msra.mxu0 %v1735
    %1797 = vmatpush.msra.mxu0 %v1731
    %1798 = vmatpush.msra.mxu0 %v1727
    %1799 = vmatpush.msra.mxu0 %v1723
    %1800 = vmatpush.msra.mxu0 %v1719
    %1801 = vmatpush.msra.mxu0 %v1715
    %1802 = vmatpush.msra.mxu0 %v1711
    %1803 = vmatpush.msra.mxu0 %v1707
    %1804 = vmatpush.msra.mxu0 %v1703
    %1805 = vmatpush.msra.mxu0 %v1699
    %1806 = vmatpush.msra.mxu0 %v1695
    %1807 = vmatpush.msra.mxu0 %v1691
    %1808 = vmatpush.msra.mxu0 %v1687
    %1809 = vmatpush.msra.mxu0 %v1683
    %1810 = vmatpush.msra.mxu0 %v1679
    %1811 = vmatpush.msra.mxu0 %v1675
    %1812 = vmatmul.f32.gmra.mxu0 %v1664
    %v1813 = vpop.f32.mrf.mxu0
    %v1814 = vadd.f32 0.0, %v1813
    %1815 = vdwg.mxu0
    %v1816 = vadd.f32 %v1668, %v1754
    %v1817 = vadd.f32 %v1669, %v1774
    %v1818 = vadd.f32 %v1670, %v1794
    %v1819 = vadd.f32 %v1671, %v1814
    %v1820 = vxor.u32 %v1816, 2147483648
    %v1821 = vmul.f32 %v1820, 1.442695
    %v1822 = vpow.pop %v1821
    %v1823 = vadd.f32 %v1822, 1.0
    %v1824 = vrcp.pop %v1823
    %v1825 = vmul.f32 %v1823, %v1824
    %v1826 = vsub.f32 1.0, %v1825
    %v1827 = vmul.f32 %v1824, %v1826
    %v1828 = vadd.f32 %v1824, %v1827
    %vm1829 = vweird.f32 %v1823
    %vm1830 = vweird.f32 %v1824
    %vm1831 = vmor %vm1829, %vm1830
    %v1832 = vsel %vm1831, %v1824, %v1828
    %v1833 = vand.u32 2147483647, %v1823
    %vm1834 = vcmp.eq.f32.partialorder %v1833, 8.507059e+37
    %v1835 = vand.u32 %v1823, 2147483648
    %v1836 = vor.u32 1.1754944e-38, %v1835
    %v1837 = vsel %vm1834, %v1836, %v1832
    %v1838 = vmul.f32 1.0, %v1837
    %v1839 = vxor.u32 %v1817, 2147483648
    %v1840 = vmul.f32 %v1839, 1.442695
    %v1841 = vpow.pop %v1840
    %v1842 = vadd.f32 %v1841, 1.0
    %v1843 = vrcp.pop %v1842
    %v1844 = vmul.f32 %v1842, %v1843
    %v1845 = vsub.f32 1.0, %v1844
    %v1846 = vmul.f32 %v1843, %v1845
    %v1847 = vadd.f32 %v1843, %v1846
    %vm1848 = vweird.f32 %v1842
    %vm1849 = vweird.f32 %v1843
    %vm1850 = vmor %vm1848, %vm1849
    %v1851 = vsel %vm1850, %v1843, %v1847
    %v1852 = vand.u32 2147483647, %v1842
    %vm1853 = vcmp.eq.f32.partialorder %v1852, 8.507059e+37
    %v1854 = vand.u32 %v1842, 2147483648
    %v1855 = vor.u32 1.1754944e-38, %v1854
    %v1856 = vsel %vm1853, %v1855, %v1851
    %v1857 = vmul.f32 1.0, %v1856
    %v1858 = vtanh.pop %v1818
    %v1859 = vxor.u32 %v1819, 2147483648
    %v1860 = vmul.f32 %v1859, 1.442695
    %v1861 = vpow.pop %v1860
    %v1862 = vadd.f32 %v1861, 1.0
    %v1863 = vrcp.pop %v1862
    %v1864 = vmul.f32 %v1862, %v1863
    %v1865 = vsub.f32 1.0, %v1864
    %v1866 = vmul.f32 %v1863, %v1865
    %v1867 = vadd.f32 %v1863, %v1866
    %vm1868 = vweird.f32 %v1862
    %vm1869 = vweird.f32 %v1863
    %vm1870 = vmor %vm1868, %vm1869
    %v1871 = vsel %vm1870, %v1863, %v1867
    %v1872 = vand.u32 2147483647, %v1862
    %vm1873 = vcmp.eq.f32.partialorder %v1872, 8.507059e+37
    %v1874 = vand.u32 %v1862, 2147483648
    %v1875 = vor.u32 1.1754944e-38, %v1874
    %v1876 = vsel %vm1873, %v1875, %v1871
    %v1877 = vmul.f32 1.0, %v1876
    %v1878 = vmul.f32 %v1857, %v1662
    %v1879 = vmul.f32 %v1838, %v1858
    %v1880 = vadd.f32 %v1878, %v1879
    %v1881 = vtanh.pop %v1880
    %v1882 = vmul.f32 %v1877, %v1881
    %s1883 = scalar_lea.vmem [#allocation11], 48
    %1884 = vst [vmem:[%s1883] sm:$0xff] %v1882
    %s1885 = scalar_lea.vmem [#allocation2], 224
    %v1886 = vld [vmem:[%s1885] sm:$0xff]
    %v1887 = vld [vmem:[%s1885 + $0x8] sm:$0xff]
    %v1888 = vld [vmem:[%s1885 + $0x10] sm:$0xff]
    %v1889 = vld [vmem:[%s1885 + $0x18] sm:$0xff]
    %v1890 = vld [vmem:[#allocation8] sm:$0xff]
    %v1891 = vld [vmem:[#allocation8 + $0x8] sm:$0xff]
    %v1892 = vld [vmem:[#allocation8 + $0x10] sm:$0xff]
    %v1893 = vld [vmem:[#allocation8 + $0x18] sm:$0xff]
    %v1894 = vld [vmem:[#allocation8 + $0x20] sm:$0xff]
    %v1895 = vld [vmem:[#allocation8 + $0x28] sm:$0xff]
    %v1896 = vld [vmem:[#allocation8 + $0x30] sm:$0xff]
    %v1897 = vld [vmem:[#allocation8 + $0x38] sm:$0xff]
    %v1898 = vld [vmem:[#allocation8 + $0x40] sm:$0xff]
    %v1899 = vld [vmem:[#allocation8 + $0x48] sm:$0xff]
    %v1900 = vld [vmem:[#allocation8 + $0x50] sm:$0xff]
    %v1901 = vld [vmem:[#allocation8 + $0x58] sm:$0xff]
    %v1902 = vld [vmem:[#allocation8 + $0x60] sm:$0xff]
    %v1903 = vld [vmem:[#allocation8 + $0x68] sm:$0xff]
    %v1904 = vld [vmem:[#allocation8 + $0x70] sm:$0xff]
    %v1905 = vld [vmem:[#allocation8 + $0x78] sm:$0xff]
    %v1906 = vld [vmem:[#allocation8 + $0x80] sm:$0xff]
    %v1907 = vld [vmem:[#allocation8 + $0x88] sm:$0xff]
    %v1908 = vld [vmem:[#allocation8 + $0x90] sm:$0xff]
    %v1909 = vld [vmem:[#allocation8 + $0x98] sm:$0xff]
    %v1910 = vld [vmem:[#allocation8 + $0xa0] sm:$0xff]
    %v1911 = vld [vmem:[#allocation8 + $0xa8] sm:$0xff]
    %v1912 = vld [vmem:[#allocation8 + $0xb0] sm:$0xff]
    %v1913 = vld [vmem:[#allocation8 + $0xb8] sm:$0xff]
    %v1914 = vld [vmem:[#allocation8 + $0xc0] sm:$0xff]
    %v1915 = vld [vmem:[#allocation8 + $0xc8] sm:$0xff]
    %v1916 = vld [vmem:[#allocation8 + $0xd0] sm:$0xff]
    %v1917 = vld [vmem:[#allocation8 + $0xd8] sm:$0xff]
    %v1918 = vld [vmem:[#allocation8 + $0xe0] sm:$0xff]
    %v1919 = vld [vmem:[#allocation8 + $0xe8] sm:$0xff]
    %v1920 = vld [vmem:[#allocation8 + $0xf0] sm:$0xff]
    %v1921 = vld [vmem:[#allocation8 + $0xf8] sm:$0xff]
    %v1922 = vld [vmem:[#allocation8 + $0x100] sm:$0xff]
    %v1923 = vld [vmem:[#allocation8 + $0x108] sm:$0xff]
    %v1924 = vld [vmem:[#allocation8 + $0x110] sm:$0xff]
    %v1925 = vld [vmem:[#allocation8 + $0x118] sm:$0xff]
    %v1926 = vld [vmem:[#allocation8 + $0x120] sm:$0xff]
    %v1927 = vld [vmem:[#allocation8 + $0x128] sm:$0xff]
    %v1928 = vld [vmem:[#allocation8 + $0x130] sm:$0xff]
    %v1929 = vld [vmem:[#allocation8 + $0x138] sm:$0xff]
    %v1930 = vld [vmem:[#allocation8 + $0x140] sm:$0xff]
    %v1931 = vld [vmem:[#allocation8 + $0x148] sm:$0xff]
    %v1932 = vld [vmem:[#allocation8 + $0x150] sm:$0xff]
    %v1933 = vld [vmem:[#allocation8 + $0x158] sm:$0xff]
    %v1934 = vld [vmem:[#allocation8 + $0x160] sm:$0xff]
    %v1935 = vld [vmem:[#allocation8 + $0x168] sm:$0xff]
    %v1936 = vld [vmem:[#allocation8 + $0x170] sm:$0xff]
    %v1937 = vld [vmem:[#allocation8 + $0x178] sm:$0xff]
    %v1938 = vld [vmem:[#allocation8 + $0x180] sm:$0xff]
    %v1939 = vld [vmem:[#allocation8 + $0x188] sm:$0xff]
    %v1940 = vld [vmem:[#allocation8 + $0x190] sm:$0xff]
    %v1941 = vld [vmem:[#allocation8 + $0x198] sm:$0xff]
    %v1942 = vld [vmem:[#allocation8 + $0x1a0] sm:$0xff]
    %v1943 = vld [vmem:[#allocation8 + $0x1a8] sm:$0xff]
    %v1944 = vld [vmem:[#allocation8 + $0x1b0] sm:$0xff]
    %v1945 = vld [vmem:[#allocation8 + $0x1b8] sm:$0xff]
    %v1946 = vld [vmem:[#allocation8 + $0x1c0] sm:$0xff]
    %v1947 = vld [vmem:[#allocation8 + $0x1c8] sm:$0xff]
    %v1948 = vld [vmem:[#allocation8 + $0x1d0] sm:$0xff]
    %v1949 = vld [vmem:[#allocation8 + $0x1d8] sm:$0xff]
    %v1950 = vld [vmem:[#allocation8 + $0x1e0] sm:$0xff]
    %v1951 = vld [vmem:[#allocation8 + $0x1e8] sm:$0xff]
    %v1952 = vld [vmem:[#allocation8 + $0x1f0] sm:$0xff]
    %v1953 = vld [vmem:[#allocation8 + $0x1f8] sm:$0xff]
    %1954 = vmatpush.msra.mxu0 %v1950
    %1955 = vmatpush.msra.mxu0 %v1946
    %1956 = vmatpush.msra.mxu0 %v1942
    %1957 = vmatpush.msra.mxu0 %v1938
    %1958 = vmatpush.msra.mxu0 %v1934
    %1959 = vmatpush.msra.mxu0 %v1930
    %1960 = vmatpush.msra.mxu0 %v1926
    %1961 = vmatpush.msra.mxu0 %v1922
    %1962 = vmatpush.msra.mxu0 %v1918
    %1963 = vmatpush.msra.mxu0 %v1914
    %1964 = vmatpush.msra.mxu0 %v1910
    %1965 = vmatpush.msra.mxu0 %v1906
    %1966 = vmatpush.msra.mxu0 %v1902
    %1967 = vmatpush.msra.mxu0 %v1898
    %1968 = vmatpush.msra.mxu0 %v1894
    %1969 = vmatpush.msra.mxu0 %v1890
    %1970 = vmatmul.f32.gmra.mxu0 %v1882
    %v1971 = vpop.f32.mrf.mxu0
    %v1972 = vadd.f32 0.0, %v1971
    %1973 = vdwg.mxu0
    %1974 = vmatpush.msra.mxu0 %v1951
    %1975 = vmatpush.msra.mxu0 %v1947
    %1976 = vmatpush.msra.mxu0 %v1943
    %1977 = vmatpush.msra.mxu0 %v1939
    %1978 = vmatpush.msra.mxu0 %v1935
    %1979 = vmatpush.msra.mxu0 %v1931
    %1980 = vmatpush.msra.mxu0 %v1927
    %1981 = vmatpush.msra.mxu0 %v1923
    %1982 = vmatpush.msra.mxu0 %v1919
    %1983 = vmatpush.msra.mxu0 %v1915
    %1984 = vmatpush.msra.mxu0 %v1911
    %1985 = vmatpush.msra.mxu0 %v1907
    %1986 = vmatpush.msra.mxu0 %v1903
    %1987 = vmatpush.msra.mxu0 %v1899
    %1988 = vmatpush.msra.mxu0 %v1895
    %1989 = vmatpush.msra.mxu0 %v1891
    %1990 = vmatmul.f32.gmra.mxu0 %v1882
    %v1991 = vpop.f32.mrf.mxu0
    %v1992 = vadd.f32 0.0, %v1991
    %1993 = vdwg.mxu0
    %1994 = vmatpush.msra.mxu0 %v1952
    %1995 = vmatpush.msra.mxu0 %v1948
    %1996 = vmatpush.msra.mxu0 %v1944
    %1997 = vmatpush.msra.mxu0 %v1940
    %1998 = vmatpush.msra.mxu0 %v1936
    %1999 = vmatpush.msra.mxu0 %v1932
    %2000 = vmatpush.msra.mxu0 %v1928
    %2001 = vmatpush.msra.mxu0 %v1924
    %2002 = vmatpush.msra.mxu0 %v1920
    %2003 = vmatpush.msra.mxu0 %v1916
    %2004 = vmatpush.msra.mxu0 %v1912
    %2005 = vmatpush.msra.mxu0 %v1908
    %2006 = vmatpush.msra.mxu0 %v1904
    %2007 = vmatpush.msra.mxu0 %v1900
    %2008 = vmatpush.msra.mxu0 %v1896
    %2009 = vmatpush.msra.mxu0 %v1892
    %2010 = vmatmul.f32.gmra.mxu0 %v1882
    %v2011 = vpop.f32.mrf.mxu0
    %v2012 = vadd.f32 0.0, %v2011
    %2013 = vdwg.mxu0
    %2014 = vmatpush.msra.mxu0 %v1953
    %2015 = vmatpush.msra.mxu0 %v1949
    %2016 = vmatpush.msra.mxu0 %v1945
    %2017 = vmatpush.msra.mxu0 %v1941
    %2018 = vmatpush.msra.mxu0 %v1937
    %2019 = vmatpush.msra.mxu0 %v1933
    %2020 = vmatpush.msra.mxu0 %v1929
    %2021 = vmatpush.msra.mxu0 %v1925
    %2022 = vmatpush.msra.mxu0 %v1921
    %2023 = vmatpush.msra.mxu0 %v1917
    %2024 = vmatpush.msra.mxu0 %v1913
    %2025 = vmatpush.msra.mxu0 %v1909
    %2026 = vmatpush.msra.mxu0 %v1905
    %2027 = vmatpush.msra.mxu0 %v1901
    %2028 = vmatpush.msra.mxu0 %v1897
    %2029 = vmatpush.msra.mxu0 %v1893
    %2030 = vmatmul.f32.gmra.mxu0 %v1882
    %v2031 = vpop.f32.mrf.mxu0
    %v2032 = vadd.f32 0.0, %v2031
    %2033 = vdwg.mxu0
    %v2034 = vadd.f32 %v1886, %v1972
    %v2035 = vadd.f32 %v1887, %v1992
    %v2036 = vadd.f32 %v1888, %v2012
    %v2037 = vadd.f32 %v1889, %v2032
    %v2038 = vxor.u32 %v2034, 2147483648
    %v2039 = vmul.f32 %v2038, 1.442695
    %v2040 = vpow.pop %v2039
    %v2041 = vadd.f32 %v2040, 1.0
    %v2042 = vrcp.pop %v2041
    %v2043 = vmul.f32 %v2041, %v2042
    %v2044 = vsub.f32 1.0, %v2043
    %v2045 = vmul.f32 %v2042, %v2044
    %v2046 = vadd.f32 %v2042, %v2045
    %vm2047 = vweird.f32 %v2041
    %vm2048 = vweird.f32 %v2042
    %vm2049 = vmor %vm2047, %vm2048
    %v2050 = vsel %vm2049, %v2042, %v2046
    %v2051 = vand.u32 2147483647, %v2041
    %vm2052 = vcmp.eq.f32.partialorder %v2051, 8.507059e+37
    %v2053 = vand.u32 %v2041, 2147483648
    %v2054 = vor.u32 1.1754944e-38, %v2053
    %v2055 = vsel %vm2052, %v2054, %v2050
    %v2056 = vmul.f32 1.0, %v2055
    %v2057 = vxor.u32 %v2035, 2147483648
    %v2058 = vmul.f32 %v2057, 1.442695
    %v2059 = vpow.pop %v2058
    %v2060 = vadd.f32 %v2059, 1.0
    %v2061 = vrcp.pop %v2060
    %v2062 = vmul.f32 %v2060, %v2061
    %v2063 = vsub.f32 1.0, %v2062
    %v2064 = vmul.f32 %v2061, %v2063
    %v2065 = vadd.f32 %v2061, %v2064
    %vm2066 = vweird.f32 %v2060
    %vm2067 = vweird.f32 %v2061
    %vm2068 = vmor %vm2066, %vm2067
    %v2069 = vsel %vm2068, %v2061, %v2065
    %v2070 = vand.u32 2147483647, %v2060
    %vm2071 = vcmp.eq.f32.partialorder %v2070, 8.507059e+37
    %v2072 = vand.u32 %v2060, 2147483648
    %v2073 = vor.u32 1.1754944e-38, %v2072
    %v2074 = vsel %vm2071, %v2073, %v2069
    %v2075 = vmul.f32 1.0, %v2074
    %v2076 = vtanh.pop %v2036
    %v2077 = vxor.u32 %v2037, 2147483648
    %v2078 = vmul.f32 %v2077, 1.442695
    %v2079 = vpow.pop %v2078
    %v2080 = vadd.f32 %v2079, 1.0
    %v2081 = vrcp.pop %v2080
    %v2082 = vmul.f32 %v2080, %v2081
    %v2083 = vsub.f32 1.0, %v2082
    %v2084 = vmul.f32 %v2081, %v2083
    %v2085 = vadd.f32 %v2081, %v2084
    %vm2086 = vweird.f32 %v2080
    %vm2087 = vweird.f32 %v2081
    %vm2088 = vmor %vm2086, %vm2087
    %v2089 = vsel %vm2088, %v2081, %v2085
    %v2090 = vand.u32 2147483647, %v2080
    %vm2091 = vcmp.eq.f32.partialorder %v2090, 8.507059e+37
    %v2092 = vand.u32 %v2080, 2147483648
    %v2093 = vor.u32 1.1754944e-38, %v2092
    %v2094 = vsel %vm2091, %v2093, %v2089
    %v2095 = vmul.f32 1.0, %v2094
    %v2096 = vmul.f32 %v2075, %v1880
    %v2097 = vmul.f32 %v2056, %v2076
    %v2098 = vadd.f32 %v2096, %v2097
    %v2099 = vtanh.pop %v2098
    %v2100 = vmul.f32 %v2095, %v2099
    %s2101 = scalar_lea.vmem [#allocation11], 56
    %2102 = vst [vmem:[%s2101] sm:$0xff] %v2100
    %2103 = vst [vmem:[#allocation12] sm:$0xff] %v2100
    %2104 = vst [vmem:[#allocation14] sm:$0xff] %v2098
    // Predicated region
    $region34: #{tpu_custom_call.1} parent=1 // pred_check
      _
    $region35: #{tpu_custom_call.1} parent=1 // pred_check_branch
      %2106 = sbr.rel (0) target = $region37
    $region36: #{tpu_custom_call.1} parent=1 // pred_region
      %2108 = vsyncadd [#allocation5], 0
      %s2109 = sshll.u32 [#allocation11], 4
      %s2110 = int_to_ptr.vmem [resolvable:$true] %s2109
      %s2111 = sshll.u32 %s4, 4
      %s2112 = int_to_ptr.hbm [resolvable:$true] %s2111
      %2117 = dma.vmem_to_hbm [thread:$0]  %s2110, 1024, %s2112, [#allocation5], 128, 128, 8
    $region37: #{tpu_custom_call.1} parent=1 // pred_fallthru
      _
    // Predicated region
    $region38: #{tpu_custom_call.1} parent=1 // pred_check
      _
    $region39: #{tpu_custom_call.1} parent=1 // pred_check_branch
      %2119 = sbr.rel (0) target = $region41
    $region40: #{tpu_custom_call.1} parent=1 // pred_region
      %2121 = vsyncadd [#allocation13], 0
      %s2123 = sshll.u32 [#allocation12], 4
      %s2124 = int_to_ptr.vmem [resolvable:$true] %s2123
      %s2125 = sshll.u32 %s5, 4
      %s2126 = int_to_ptr.hbm [resolvable:$true] %s2125
      %2128 = dma.vmem_to_hbm [thread:$0]  %s2124, 128, %s2126, [#allocation13]
    $region41: #{tpu_custom_call.1} parent=1 // pred_fallthru
      _
    // Predicated region
    $region42: #{tpu_custom_call.1} parent=1 // pred_check
      _
    $region43: #{tpu_custom_call.1} parent=1 // pred_check_branch
      %2130 = sbr.rel (0) target = $region45
    $region44: #{tpu_custom_call.1} parent=1 // pred_region
      %2132 = vsyncadd [#allocation13], 0
      %s2134 = sshll.u32 [#allocation14], 4
      %s2135 = int_to_ptr.vmem [resolvable:$true] %s2134
      %s2136 = sshll.u32 %s6, 4
      %s2137 = int_to_ptr.hbm [resolvable:$true] %s2136
      %2139 = dma.vmem_to_hbm [thread:$0]  %s2135, 128, %s2137, [#allocation13]
    $region45: #{tpu_custom_call.1} parent=1 // pred_fallthru
      _
    // Predicated region
    $region46: #{tpu_custom_call.1} parent=1 // pred_check
      _
    $region47: #{tpu_custom_call.1} parent=1 // pred_check_branch
      %2141 = sbr.rel (0) target = $region49
    $region48: #{tpu_custom_call.1} parent=1 // pred_region
      %2143 = dma.done [#allocation5], 1024
    $region49: #{tpu_custom_call.1} parent=1 // pred_fallthru
      _
    // Predicated region
    $region50: #{tpu_custom_call.1} parent=1 // pred_check
      _
    $region51: #{tpu_custom_call.1} parent=1 // pred_check_branch
      %2145 = sbr.rel (0) target = $region53
    $region52: #{tpu_custom_call.1} parent=1 // pred_region
      %2147 = dma.done [#allocation13], 128
    $region53: #{tpu_custom_call.1} parent=1 // pred_fallthru
      _
    // Predicated region
    $region54: #{tpu_custom_call.1} parent=1 // pred_check
      _
    $region55: #{tpu_custom_call.1} parent=1 // pred_check_branch
      %2149 = sbr.rel (0) target = $region57
    $region56: #{tpu_custom_call.1} parent=1 // pred_region
      %2151 = dma.done [#allocation13], 128
    $region57: #{tpu_custom_call.1} parent=1 // pred_fallthru
      _
    %2152 = vsyncpa [#allocation4], 1
    %2153 = vsyncpa [#allocation7], 1
    %2154 = vsyncpa [#allocation10], 1
    %2155 = vsyncpa [#allocation5], 1
    %2156 = vsyncpa [#allocation13], 1

</llo_original>
